<compile_context>
chip_gen: v5e
topology: v5e:2x2
jax: 0.10.0
libtpu: 0.0.40
codegen_flags: <defaults>
</compile_context>

<pallas_src>
import functools

import jax
import jax.numpy as jnp
from jax.experimental import pallas as pl
from jax.experimental.pallas import tpu as pltpu


_VMEM_LIMIT = 48 * 1024 * 1024   # below v7x's 64 MiB physical VMEM


# ------------------------------ small helpers ------------------------------

def _round_up(x, m):
    return (x + m - 1) // m * m


def _m_tiling(m):
    """Row-tile size (multiple of 8) and padded row count for (M, ...) slabs."""
    if m <= 512:
        tm = _round_up(max(m, 1), 8)
    else:
        tm = 512
    return tm, _round_up(m, tm)


def _pad_rows(a, m_pad):
    m = a.shape[0]
    if m == m_pad:
        return a
    return jnp.pad(a, ((0, m_pad - m), (0, 0)))


def _im2col(x, k):
    """(B,H,W,C) -> (B*H*W, k*k*C) patches, SAME padding, stride 1.

    Plain-JAX glue (pad + static slices + one concat) that XLA fuses; the
    k*k*C-wide columns feed one big MXU matmul inside the Pallas kernel."""
    b, h, w, c = x.shape
    if k == 1:
        return x.reshape(b * h * w, c)
    pad = k // 2
    xp = jnp.pad(x, ((0, 0), (pad, pad), (pad, pad), (0, 0)))
    cols = [xp[:, dh:dh + h, dw:dw + w, :] for dh in range(k) for dw in range(k)]
    return jnp.concatenate(cols, axis=-1).reshape(b * h * w, k * k * c)


def _compiler_params(semantics):
    return pltpu.CompilerParams(dimension_semantics=semantics,
                                vmem_limit_bytes=_VMEM_LIMIT)


# ----------------------------- Pallas kernels -------------------------------

def _gates1_kernel(xc_ref, hc_ref, mc_ref, wx_ref, wh_ref, wm_ref,
                   c_ref, m_ref, out_ref, *, C):
    """Stage 1 of one ST-LSTM cell: the three im2col matmuls (bf16 operands,
    f32 accumulation) fused with all gate nonlinearities (f32)."""
    xc = jnp.dot(xc_ref[...], wx_ref[...], preferred_element_type=jnp.float32)
    hc = jnp.dot(hc_ref[...], wh_ref[...], preferred_element_type=jnp.float32)
    mc = jnp.dot(mc_ref[...], wm_ref[...], preferred_element_type=jnp.float32)

    fb = 1.0  # forget bias
    i_t = jax.nn.sigmoid(xc[:, 0 * C:1 * C] + hc[:, 0 * C:1 * C])
    f_t = jax.nn.sigmoid(xc[:, 1 * C:2 * C] + hc[:, 1 * C:2 * C] + fb)
    g_t = jnp.tanh(xc[:, 2 * C:3 * C] + hc[:, 2 * C:3 * C])
    c_new = f_t * c_ref[...] + i_t * g_t

    i_tp = jax.nn.sigmoid(xc[:, 3 * C:4 * C] + mc[:, 0 * C:1 * C])
    f_tp = jax.nn.sigmoid(xc[:, 4 * C:5 * C] + mc[:, 1 * C:2 * C] + fb)
    g_tp = jnp.tanh(xc[:, 5 * C:6 * C] + mc[:, 2 * C:3 * C])
    m_new = f_tp * m_ref[...] + i_tp * g_tp

    o_base = xc[:, 6 * C:7 * C] + hc[:, 3 * C:4 * C]
    # Single lane-fused store: [c_new | m_new | o_base]; mem = first 2C cols.
    out_ref[...] = jnp.concatenate([c_new, m_new, o_base], axis=-1)


def _gates2_kernel(memc_ref, wcomb_ref, obase_ref, h_ref, *, C):
    """Stage 2: merged conv_o (kxk) + cell 1x1 conv over mem (one matmul,
    1x1 embedded at the centre tap) fused with the output gate."""
    oc = jnp.dot(memc_ref[...], wcomb_ref[...],
                 preferred_element_type=jnp.float32)
    o_t = jax.nn.sigmoid(obase_ref[...] + oc[:, :C])
    h_ref[...] = o_t * jnp.tanh(oc[:, C:])


def _gates2_last_kernel(memc_ref, wcomb_ref, wcl_ref, obase_ref,
                        h_ref, xgen_ref, *, C):
    """Stage 2 for the last layer: additionally fuses the network-level 1x1
    conv_last producing x_gen (saves a pallas_call + an HBM round trip)."""
    oc = jnp.dot(memc_ref[...], wcomb_ref[...],
                 preferred_element_type=jnp.float32)
    o_t = jax.nn.sigmoid(obase_ref[...] + oc[:, :C])
    h_new = o_t * jnp.tanh(oc[:, C:])
    h_ref[...] = h_new
    xgen_ref[...] = jnp.dot(h_new.astype(wcl_ref.dtype), wcl_ref[...],
                            preferred_element_type=jnp.float32)


def _sse_kernel(p_ref, t_ref, o_ref):
    """Tiled sum of squared errors: accumulates into a (1,1) resident block."""
    @pl.when(pl.program_id(0) == 0)
    def _():
        o_ref[...] = jnp.zeros_like(o_ref)
    d = p_ref[...] - t_ref[...]
    o_ref[...] += jnp.sum(d * d, axis=(0, 1), keepdims=True)


# ----------------------------- pallas wrappers ------------------------------

def _cell_stage1(x_cols, h_cols, m_cols, wx, wh, wm, c2d, m2d, C):
    M = x_cols.shape[0]
    TM, MP = _m_tiling(M)
    kx, kh, km = x_cols.shape[1], h_cols.shape[1], m_cols.shape[1]
    row = lambda i: (i, 0)
    rep = lambda i: (0, 0)
    out = pl.pallas_call(
        functools.partial(_gates1_kernel, C=C),
        out_shape=jax.ShapeDtypeStruct((MP, 3 * C), jnp.float32),
        grid=(MP // TM,),
        in_specs=[pl.BlockSpec((TM, kx), row),
                  pl.BlockSpec((TM, kh), row),
                  pl.BlockSpec((TM, km), row),
                  pl.BlockSpec((kx, 7 * C), rep),
                  pl.BlockSpec((kh, 4 * C), rep),
                  pl.BlockSpec((km, 3 * C), rep),
                  pl.BlockSpec((TM, C), row),
                  pl.BlockSpec((TM, C), row)],
        out_specs=pl.BlockSpec((TM, 3 * C), row),
        compiler_params=_compiler_params(("parallel",)),
    )(_pad_rows(x_cols, MP), _pad_rows(h_cols, MP), _pad_rows(m_cols, MP),
      wx, wh, wm, _pad_rows(c2d, MP), _pad_rows(m2d, MP))
    return out[:M]


def _cell_stage2(mem_cols, wcomb, o_base, C, wcl=None, Cf=None):
    M = mem_cols.shape[0]
    TM, MP = _m_tiling(M)
    km = mem_cols.shape[1]
    row = lambda i: (i, 0)
    rep = lambda i: (0, 0)
    memc = _pad_rows(mem_cols, MP)
    ob = _pad_rows(o_base, MP)
    if wcl is None:
        h = pl.pallas_call(
            functools.partial(_gates2_kernel, C=C),
            out_shape=jax.ShapeDtypeStruct((MP, C), jnp.float32),
            grid=(MP // TM,),
            in_specs=[pl.BlockSpec((TM, km), row),
                      pl.BlockSpec((km, 2 * C), rep),
                      pl.BlockSpec((TM, C), row)],
            out_specs=pl.BlockSpec((TM, C), row),
            compiler_params=_compiler_params(("parallel",)),
        )(memc, wcomb, ob)
        return h[:M], None
    h, xgen = pl.pallas_call(
        functools.partial(_gates2_last_kernel, C=C),
        out_shape=(jax.ShapeDtypeStruct((MP, C), jnp.float32),
                   jax.ShapeDtypeStruct((MP, Cf), jnp.float32)),
        grid=(MP // TM,),
        in_specs=[pl.BlockSpec((TM, km), row),
                  pl.BlockSpec((km, 2 * C), rep),
                  pl.BlockSpec((C, Cf), rep),
                  pl.BlockSpec((TM, C), row)],
        out_specs=[pl.BlockSpec((TM, C), row),
                   pl.BlockSpec((TM, Cf), row)],
        compiler_params=_compiler_params(("parallel",)),
    )(memc, wcomb, wcl, ob)
    return h[:M], xgen[:M]


def _sse(pred, target):
    p = pred.reshape(-1).astype(jnp.float32)
    t = target.reshape(-1).astype(jnp.float32)
    n = p.shape[0]
    lanes = 128
    rows = -(-n // lanes)
    tr, rp = _m_tiling(rows)
    pad = rp * lanes - n
    p2 = jnp.pad(p, (0, pad)).reshape(rp, lanes)
    t2 = jnp.pad(t, (0, pad)).reshape(rp, lanes)
    row = lambda i: (i, 0)
    out = pl.pallas_call(
        _sse_kernel,
        out_shape=jax.ShapeDtypeStruct((1, 1), jnp.float32),
        grid=(rp // tr,),
        in_specs=[pl.BlockSpec((tr, lanes), row),
                  pl.BlockSpec((tr, lanes), row)],
        out_specs=pl.BlockSpec((1, 1), lambda i: (0, 0)),
        compiler_params=_compiler_params(("arbitrary",)),
    )(p2, t2)
    return out[0, 0]


# --------------------------- SpatioTemporalLSTM -----------------------------

def st_lstm_cell(wflat, x_bhwc, h2d, c2d, m2d, *, k, C, wcl=None, Cf=None):
    """One SpatioTemporalLSTMCell step.  States h/c/m are flat (M, C) f32.
    Returns (h_new, c_new, m_new, x_gen_or_None)."""
    wx, wh, wm, wcomb = wflat
    B, H, W, _ = x_bhwc.shape

    x_cols = _im2col(x_bhwc, k).astype(jnp.bfloat16)
    h_cols = _im2col(h2d.reshape(B, H, W, C), k).astype(jnp.bfloat16)
    m_cols = _im2col(m2d.reshape(B, H, W, C), k).astype(jnp.bfloat16)

    g1 = _cell_stage1(x_cols, h_cols, m_cols, wx, wh, wm, c2d, m2d, C)
    c_new = g1[:, :C]
    m_new = g1[:, C:2 * C]
    o_base = g1[:, 2 * C:]
    mem = g1[:, :2 * C]                       # [c_new | m_new]

    mem_cols = _im2col(mem.reshape(B, H, W, 2 * C), k).astype(jnp.bfloat16)
    h_new, x_gen = _cell_stage2(mem_cols, wcomb, o_base, C, wcl=wcl, Cf=Cf)
    return h_new, c_new, m_new, x_gen


# ------------------------------- weight prep ---------------------------------

def _prep_weights(params, cfg):
    """Flatten HWIO conv weights to matmul form and cast to bf16 once."""
    k = cfg.filter_size
    cells = []
    for i, p in enumerate(params['cells']):
        C = cfg.num_hidden[i]
        wx = p['wx'].reshape(-1, 7 * C).astype(jnp.bfloat16)
        wh = p['wh'].reshape(-1, 4 * C).astype(jnp.bfloat16)
        wm = p['wm'].reshape(-1, 3 * C).astype(jnp.bfloat16)
        # Merge conv_o (kxk, 2C->C) and the cell's 1x1 conv (2C->C):
        # the 1x1 lives only on the centre tap of the combined kxk weight.
        wcomb = jnp.zeros((k, k, 2 * C, 2 * C), jnp.float32)
        wcomb = wcomb.at[:, :, :, :C].set(p['wo'])
        wcomb = wcomb.at[k // 2, k // 2, :, C:].set(p['w_last'][0, 0])
        wcomb = wcomb.reshape(k * k * 2 * C, 2 * C).astype(jnp.bfloat16)
        cells.append((wx, wh, wm, wcomb))
    wcl = params['conv_last'][0, 0].astype(jnp.bfloat16)   # (C_last, Cf)
    return cells, wcl


# ------------------------------- RNN forward --------------------------------

def rnn_forward(params, frames, mask_true, cfg):
    """frames: (B, T, H, W, frame_channel); mask_true: (B, Tm, H, W, frame_channel)."""
    B, T, H, W, Cf = frames.shape
    L = cfg.num_layers
    nh = cfg.num_hidden
    k = cfg.filter_size
    M = B * H * W

    wcells, wcl = _prep_weights(params, cfg)

    h_t = [jnp.zeros((M, nh[i]), jnp.float32) for i in range(L)]
    c_t = [jnp.zeros((M, nh[i]), jnp.float32) for i in range(L)]
    memory = jnp.zeros((M, nh[0]), jnp.float32)

    next_frames = []
    x_gen = None
    for step in range(cfg.total_length - cfg.input_length):
        t = min(step, T - 1)
        # Scheduled-sampling blend stays in plain JAX so XLA fuses it into
        # the pad/slice (im2col) that feeds the first cell.
        if cfg.reverse_scheduled_sampling == 1:
            if t == 0:
                net = frames[:, t]
            else:
                mk = mask_true[:, t - 1]
                net = mk * frames[:, t] + (1.0 - mk) * x_gen
        elif t < cfg.input_length:
            net = frames[:, t]
        else:
            mk = mask_true[:, t - cfg.input_length]
            net = mk * frames[:, t] + (1.0 - mk) * x_gen

        for i in range(L):
            x_in = net if i == 0 else h_t[i - 1].reshape(B, H, W, nh[i - 1])
            is_last = (i == L - 1)
            h_new, c_new, m_new, xg = st_lstm_cell(
                wcells[i], x_in, h_t[i], c_t[i], memory, k=k, C=nh[i],
                wcl=wcl if is_last else None, Cf=Cf if is_last else None)
            h_t[i], c_t[i], memory = h_new, c_new, m_new
            if is_last:
                x_gen = xg.reshape(B, H, W, Cf)

        next_frames.append(x_gen)

    next_frames = jnp.stack(next_frames, axis=1)       # (B, Tp, H, W, Cf)

    target = frames[:, 1:]                             # matches PyTorch MSE target
    sse = _sse(next_frames, target)
    loss = sse / next_frames.size                      # MSELoss (mean)
    return next_frames, loss


# ------------------------------- parameters ---------------------------------

def init_params(key, cfg):
    frame_channel = cfg.patch_size * cfg.patch_size * cfg.img_channel
    k = cfg.filter_size
    cells = []
    for i in range(cfg.num_layers):
        in_ch = frame_channel if i == 0 else cfg.num_hidden[i - 1]
        nh = cfg.num_hidden[i]
        key, k1, k2, k3, k4, k5 = jax.random.split(key, 6)
        cells.append({
            'wx': 0.1 * jax.random.normal(k1, (k, k, in_ch, 7 * nh), jnp.float32),
            'wh': 0.1 * jax.random.normal(k2, (k, k, nh, 4 * nh), jnp.float32),
            'wm': 0.1 * jax.random.normal(k3, (k, k, nh, 3 * nh), jnp.float32),
            'wo': 0.1 * jax.random.normal(k4, (k, k, 2 * nh, nh), jnp.float32),
            'w_last': 0.1 * jax.random.normal(k5, (1, 1, 2 * nh, nh), jnp.float32),
        })
    key, kc = jax.random.split(key)
    conv_last = 0.1 * jax.random.normal(
        kc, (1, 1, cfg.num_hidden[-1], frame_channel), jnp.float32)
    return {'cells': cells, 'conv_last': conv_last}


# ----------------------------------- main ------------------------------------

if __name__ == "__main__":
    class Configs:
        pass

    cfg = Configs()
    cfg.patch_size = 4
    cfg.img_channel = 1
    cfg.img_width = 16
    cfg.filter_size = 3
    cfg.stride = 1
    # TODO(synk): the LayerNorm branch of SpatioTemporalLSTMCell is not implemented;
    # configs.layer_norm = 0 selects the bias-free conv-only branch.
    cfg.layer_norm = 0
    cfg.total_length = 6
    cfg.input_length = 1   # keeps the module's own loss contract: T_pred == total_length - 1
    cfg.reverse_scheduled_sampling = 0
    cfg.num_layers = 2
    cfg.num_hidden = [16, 16]

    frame_channel = cfg.patch_size * cfg.patch_size * cfg.img_channel  # 16
    width = cfg.img_width // cfg.patch_size                            # 4
    B = 2

    key = jax.random.PRNGKey(0)
    kp, kf, km = jax.random.split(key, 3)
    params = init_params(kp, cfg)
    frames = jax.random.normal(
        kf, (B, cfg.total_length, width, width, frame_channel), jnp.float32)
    mask_true = (jax.random.uniform(
        km, (B, cfg.total_length - cfg.input_length - 1,
             width, width, frame_channel)) > 0.5).astype(jnp.float32)

    fwd = jax.jit(lambda p, f, m: rnn_forward(p, f, m, cfg))
    next_frames, loss = fwd(params, frames, mask_true)
    jax.block_until_ready((next_frames, loss))

    assert next_frames.shape == (B, cfg.total_length - cfg.input_length,
                                 width, width, frame_channel)
    assert bool(jnp.isfinite(loss))
    print("KERNEL_OK")
</pallas_src>

<mosaic_0001>
module attributes {stable_mosaic.version = 11 : i64} {
  func.func @_gates1_kernel(%arg0: i32, %arg1: memref<32x144xbf16, #tpu.memory_space<vmem>>, %arg2: memref<32x144xbf16, #tpu.memory_space<vmem>>, %arg3: memref<32x144xbf16, #tpu.memory_space<vmem>>, %arg4: memref<144x112xbf16, #tpu.memory_space<vmem>>, %arg5: memref<144x64xbf16, #tpu.memory_space<vmem>>, %arg6: memref<144x48xbf16, #tpu.memory_space<vmem>>, %arg7: memref<32x16xf32, #tpu.memory_space<vmem>>, %arg8: memref<32x16xf32, #tpu.memory_space<vmem>>, %arg9: memref<32x48xf32, #tpu.memory_space<vmem>>) attributes {dimension_semantics = [#tpu.dimension_semantics<parallel>], iteration_bounds = array<i64: 1>, scalar_prefetch = 0 : i64, scratch_operands = 0 : i64, tpu.core_type = #tpu.core_type<tc>, window_params = [{transform_indices = @transform_0, window_bounds = array<i64: 32, 144>}, {transform_indices = @transform_1, window_bounds = array<i64: 32, 144>}, {transform_indices = @transform_2, window_bounds = array<i64: 32, 144>}, {pipeline_mode = #tpu.pipeline_mode<synchronous>, transform_indices = @transform_3, window_bounds = array<i64: 144, 112>}, {pipeline_mode = #tpu.pipeline_mode<synchronous>, transform_indices = @transform_4, window_bounds = array<i64: 144, 64>}, {pipeline_mode = #tpu.pipeline_mode<synchronous>, transform_indices = @transform_5, window_bounds = array<i64: 144, 48>}, {transform_indices = @transform_6, window_bounds = array<i64: 32, 16>}, {transform_indices = @transform_7, window_bounds = array<i64: 32, 16>}, {transform_indices = @transform_8, window_bounds = array<i64: 32, 48>}]} {
    %c0 = arith.constant 0 : index
    %c0_0 = arith.constant 0 : index
    %0 = vector.load %arg1[%c0, %c0_0] : memref<32x144xbf16, #tpu.memory_space<vmem>>, vector<32x144xbf16>
    %c0_1 = arith.constant 0 : index
    %c0_2 = arith.constant 0 : index
    %1 = vector.load %arg4[%c0_1, %c0_2] : memref<144x112xbf16, #tpu.memory_space<vmem>>, vector<144x112xbf16>
    %cst = arith.constant dense<0.000000e+00> : vector<32x112xf32>
    %2 = tpu.matmul %0, %1, %cst {dimension_numbers = #tpu.dot_dimension_numbers<[1], [0], [0], [1], [0, 0, 1, 1], [], []>} : vector<32x144xbf16>, vector<144x112xbf16>, vector<32x112xf32> -> vector<32x112xf32>
    %c0_3 = arith.constant 0 : index
    %c0_4 = arith.constant 0 : index
    %3 = vector.load %arg2[%c0_3, %c0_4] : memref<32x144xbf16, #tpu.memory_space<vmem>>, vector<32x144xbf16>
    %c0_5 = arith.constant 0 : index
    %c0_6 = arith.constant 0 : index
    %4 = vector.load %arg5[%c0_5, %c0_6] : memref<144x64xbf16, #tpu.memory_space<vmem>>, vector<144x64xbf16>
    %cst_7 = arith.constant dense<0.000000e+00> : vector<32x64xf32>
    %5 = tpu.matmul %3, %4, %cst_7 {dimension_numbers = #tpu.dot_dimension_numbers<[1], [0], [0], [1], [0, 0, 1, 1], [], []>} : vector<32x144xbf16>, vector<144x64xbf16>, vector<32x64xf32> -> vector<32x64xf32>
    %c0_8 = arith.constant 0 : index
    %c0_9 = arith.constant 0 : index
    %6 = vector.load %arg3[%c0_8, %c0_9] : memref<32x144xbf16, #tpu.memory_space<vmem>>, vector<32x144xbf16>
    %c0_10 = arith.constant 0 : index
    %c0_11 = arith.constant 0 : index
    %7 = vector.load %arg6[%c0_10, %c0_11] : memref<144x48xbf16, #tpu.memory_space<vmem>>, vector<144x48xbf16>
    %cst_12 = arith.constant dense<0.000000e+00> : vector<32x48xf32>
    %8 = tpu.matmul %6, %7, %cst_12 {dimension_numbers = #tpu.dot_dimension_numbers<[1], [0], [0], [1], [0, 0, 1, 1], [], []>} : vector<32x144xbf16>, vector<144x48xbf16>, vector<32x48xf32> -> vector<32x48xf32>
    %9 = vector.extract_strided_slice %2 {offsets = [0, 0], sizes = [32, 16], strides = [1, 1]} : vector<32x112xf32> to vector<32x16xf32>
    %10 = vector.extract_strided_slice %5 {offsets = [0, 0], sizes = [32, 16], strides = [1, 1]} : vector<32x64xf32> to vector<32x16xf32>
    %11 = arith.addf %9, %10 : vector<32x16xf32>
    %12 = arith.negf %11 : vector<32x16xf32>
    %13 = math.exp %12 : vector<32x16xf32>
    %cst_13 = arith.constant 1.000000e+00 : f32
    %14 = vector.broadcast %cst_13 : f32 to vector<32x16xf32>
    %15 = arith.addf %14, %13 : vector<32x16xf32>
    %16 = arith.divf %14, %15 : vector<32x16xf32>
    %17 = vector.extract_strided_slice %2 {offsets = [0, 16], sizes = [32, 16], strides = [1, 1]} : vector<32x112xf32> to vector<32x16xf32>
    %18 = vector.extract_strided_slice %5 {offsets = [0, 16], sizes = [32, 16], strides = [1, 1]} : vector<32x64xf32> to vector<32x16xf32>
    %19 = arith.addf %17, %18 : vector<32x16xf32>
    %cst_14 = arith.constant 1.000000e+00 : f32
    %20 = vector.broadcast %cst_14 : f32 to vector<32x16xf32>
    %21 = arith.addf %19, %20 : vector<32x16xf32>
    %22 = arith.negf %21 : vector<32x16xf32>
    %23 = math.exp %22 : vector<32x16xf32>
    %cst_15 = arith.constant 1.000000e+00 : f32
    %24 = vector.broadcast %cst_15 : f32 to vector<32x16xf32>
    %25 = arith.addf %24, %23 : vector<32x16xf32>
    %26 = arith.divf %24, %25 : vector<32x16xf32>
    %27 = vector.extract_strided_slice %2 {offsets = [0, 32], sizes = [32, 16], strides = [1, 1]} : vector<32x112xf32> to vector<32x16xf32>
    %28 = vector.extract_strided_slice %5 {offsets = [0, 32], sizes = [32, 16], strides = [1, 1]} : vector<32x64xf32> to vector<32x16xf32>
    %29 = arith.addf %27, %28 : vector<32x16xf32>
    %30 = math.tanh %29 : vector<32x16xf32>
    %c0_16 = arith.constant 0 : index
    %c0_17 = arith.constant 0 : index
    %31 = vector.load %arg7[%c0_16, %c0_17] : memref<32x16xf32, #tpu.memory_space<vmem>>, vector<32x16xf32>
    %32 = arith.mulf %26, %31 : vector<32x16xf32>
    %33 = arith.mulf %16, %30 : vector<32x16xf32>
    %34 = arith.addf %32, %33 : vector<32x16xf32>
    %35 = vector.extract_strided_slice %2 {offsets = [0, 48], sizes = [32, 16], strides = [1, 1]} : vector<32x112xf32> to vector<32x16xf32>
    %36 = vector.extract_strided_slice %8 {offsets = [0, 0], sizes = [32, 16], strides = [1, 1]} : vector<32x48xf32> to vector<32x16xf32>
    %37 = arith.addf %35, %36 : vector<32x16xf32>
    %38 = arith.negf %37 : vector<32x16xf32>
    %39 = math.exp %38 : vector<32x16xf32>
    %cst_18 = arith.constant 1.000000e+00 : f32
    %40 = vector.broadcast %cst_18 : f32 to vector<32x16xf32>
    %41 = arith.addf %40, %39 : vector<32x16xf32>
    %42 = arith.divf %40, %41 : vector<32x16xf32>
    %43 = vector.extract_strided_slice %2 {offsets = [0, 64], sizes = [32, 16], strides = [1, 1]} : vector<32x112xf32> to vector<32x16xf32>
    %44 = vector.extract_strided_slice %8 {offsets = [0, 16], sizes = [32, 16], strides = [1, 1]} : vector<32x48xf32> to vector<32x16xf32>
    %45 = arith.addf %43, %44 : vector<32x16xf32>
    %cst_19 = arith.constant 1.000000e+00 : f32
    %46 = vector.broadcast %cst_19 : f32 to vector<32x16xf32>
    %47 = arith.addf %45, %46 : vector<32x16xf32>
    %48 = arith.negf %47 : vector<32x16xf32>
    %49 = math.exp %48 : vector<32x16xf32>
    %cst_20 = arith.constant 1.000000e+00 : f32
    %50 = vector.broadcast %cst_20 : f32 to vector<32x16xf32>
    %51 = arith.addf %50, %49 : vector<32x16xf32>
    %52 = arith.divf %50, %51 : vector<32x16xf32>
    %53 = vector.extract_strided_slice %2 {offsets = [0, 80], sizes = [32, 16], strides = [1, 1]} : vector<32x112xf32> to vector<32x16xf32>
    %54 = vector.extract_strided_slice %8 {offsets = [0, 32], sizes = [32, 16], strides = [1, 1]} : vector<32x48xf32> to vector<32x16xf32>
    %55 = arith.addf %53, %54 : vector<32x16xf32>
    %56 = math.tanh %55 : vector<32x16xf32>
    %c0_21 = arith.constant 0 : index
    %c0_22 = arith.constant 0 : index
    %57 = vector.load %arg8[%c0_21, %c0_22] : memref<32x16xf32, #tpu.memory_space<vmem>>, vector<32x16xf32>
    %58 = arith.mulf %52, %57 : vector<32x16xf32>
    %59 = arith.mulf %42, %56 : vector<32x16xf32>
    %60 = arith.addf %58, %59 : vector<32x16xf32>
    %61 = vector.extract_strided_slice %2 {offsets = [0, 96], sizes = [32, 16], strides = [1, 1]} : vector<32x112xf32> to vector<32x16xf32>
    %62 = vector.extract_strided_slice %5 {offsets = [0, 48], sizes = [32, 16], strides = [1, 1]} : vector<32x64xf32> to vector<32x16xf32>
    %63 = arith.addf %61, %62 : vector<32x16xf32>
    %64 = tpu.concatenate %34, %60, %63 in 1 : vector<32x16xf32>, vector<32x16xf32>, vector<32x16xf32> -> vector<32x48xf32>
    %c0_23 = arith.constant 0 : index
    %c0_24 = arith.constant 0 : index
    %65 = vector.load %arg9[%c0_23, %c0_24] : memref<32x48xf32, #tpu.memory_space<vmem>>, vector<32x48xf32>
    tpu.vector_store %arg9[%c0_23, %c0_24], %64 {strides = array<i32>} : memref<32x48xf32, #tpu.memory_space<vmem>>, vector<32x48xf32>,
    return
  }
  func.func @transform_0(%arg0: i32) -> (i32, i32) {
    %c0_i32 = arith.constant 0 : i32
    %c0_i32_0 = arith.constant 0 : i32
    return %arg0, %c0_i32 : i32, i32
  }
  func.func @transform_1(%arg0: i32) -> (i32, i32) {
    %c0_i32 = arith.constant 0 : i32
    %c0_i32_0 = arith.constant 0 : i32
    return %arg0, %c0_i32 : i32, i32
  }
  func.func @transform_2(%arg0: i32) -> (i32, i32) {
    %c0_i32 = arith.constant 0 : i32
    %c0_i32_0 = arith.constant 0 : i32
    return %arg0, %c0_i32 : i32, i32
  }
  func.func @transform_3(%arg0: i32) -> (i32, i32) {
    %c0_i32 = arith.constant 0 : i32
    %c0_i32_0 = arith.constant 0 : i32
    %c0_i32_1 = arith.constant 0 : i32
    return %c0_i32, %c0_i32_0 : i32, i32
  }
  func.func @transform_4(%arg0: i32) -> (i32, i32) {
    %c0_i32 = arith.constant 0 : i32
    %c0_i32_0 = arith.constant 0 : i32
    %c0_i32_1 = arith.constant 0 : i32
    return %c0_i32, %c0_i32_0 : i32, i32
  }
  func.func @transform_5(%arg0: i32) -> (i32, i32) {
    %c0_i32 = arith.constant 0 : i32
    %c0_i32_0 = arith.constant 0 : i32
    %c0_i32_1 = arith.constant 0 : i32
    return %c0_i32, %c0_i32_0 : i32, i32
  }
  func.func @transform_6(%arg0: i32) -> (i32, i32) {
    %c0_i32 = arith.constant 0 : i32
    %c0_i32_0 = arith.constant 0 : i32
    return %arg0, %c0_i32 : i32, i32
  }
  func.func @transform_7(%arg0: i32) -> (i32, i32) {
    %c0_i32 = arith.constant 0 : i32
    %c0_i32_0 = arith.constant 0 : i32
    return %arg0, %c0_i32 : i32, i32
  }
  func.func @transform_8(%arg0: i32) -> (i32, i32) {
    %c0_i32 = arith.constant 0 : i32
    %c0_i32_0 = arith.constant 0 : i32
    return %arg0, %c0_i32 : i32, i32
  }
}

module attributes {stable_mosaic.version = 11 : i64} {
  func.func @_gates2_kernel(%arg0: i32, %arg1: memref<32x288xbf16, #tpu.memory_space<vmem>>, %arg2: memref<288x32xbf16, #tpu.memory_space<vmem>>, %arg3: memref<32x16xf32, #tpu.memory_space<vmem>>, %arg4: memref<32x16xf32, #tpu.memory_space<vmem>>) attributes {dimension_semantics = [#tpu.dimension_semantics<parallel>], iteration_bounds = array<i64: 1>, scalar_prefetch = 0 : i64, scratch_operands = 0 : i64, tpu.core_type = #tpu.core_type<tc>, window_params = [{transform_indices = @transform_0, window_bounds = array<i64: 32, 288>}, {pipeline_mode = #tpu.pipeline_mode<synchronous>, transform_indices = @transform_1, window_bounds = array<i64: 288, 32>}, {transform_indices = @transform_2, window_bounds = array<i64: 32, 16>}, {transform_indices = @transform_3, window_bounds = array<i64: 32, 16>}]} {
    %c0 = arith.constant 0 : index
    %c0_0 = arith.constant 0 : index
    %0 = vector.load %arg1[%c0, %c0_0] : memref<32x288xbf16, #tpu.memory_space<vmem>>, vector<32x288xbf16>
    %c0_1 = arith.constant 0 : index
    %c0_2 = arith.constant 0 : index
    %1 = vector.load %arg2[%c0_1, %c0_2] : memref<288x32xbf16, #tpu.memory_space<vmem>>, vector<288x32xbf16>
    %cst = arith.constant dense<0.000000e+00> : vector<32x32xf32>
    %2 = tpu.matmul %0, %1, %cst {dimension_numbers = #tpu.dot_dimension_numbers<[1], [0], [0], [1], [0, 0, 1, 1], [], []>} : vector<32x288xbf16>, vector<288x32xbf16>, vector<32x32xf32> -> vector<32x32xf32>
    %c0_3 = arith.constant 0 : index
    %c0_4 = arith.constant 0 : index
    %3 = vector.load %arg3[%c0_3, %c0_4] : memref<32x16xf32, #tpu.memory_space<vmem>>, vector<32x16xf32>
    %4 = vector.extract_strided_slice %2 {offsets = [0, 0], sizes = [32, 16], strides = [1, 1]} : vector<32x32xf32> to vector<32x16xf32>
    %5 = arith.addf %3, %4 : vector<32x16xf32>
    %6 = arith.negf %5 : vector<32x16xf32>
    %7 = math.exp %6 : vector<32x16xf32>
    %cst_5 = arith.constant 1.000000e+00 : f32
    %8 = vector.broadcast %cst_5 : f32 to vector<32x16xf32>
    %9 = arith.addf %8, %7 : vector<32x16xf32>
    %10 = arith.divf %8, %9 : vector<32x16xf32>
    %11 = vector.extract_strided_slice %2 {offsets = [0, 16], sizes = [32, 16], strides = [1, 1]} : vector<32x32xf32> to vector<32x16xf32>
    %12 = math.tanh %11 : vector<32x16xf32>
    %13 = arith.mulf %10, %12 : vector<32x16xf32>
    %c0_6 = arith.constant 0 : index
    %c0_7 = arith.constant 0 : index
    %14 = vector.load %arg4[%c0_6, %c0_7] : memref<32x16xf32, #tpu.memory_space<vmem>>, vector<32x16xf32>
    tpu.vector_store %arg4[%c0_6, %c0_7], %13 {strides = array<i32>} : memref<32x16xf32, #tpu.memory_space<vmem>>, vector<32x16xf32>,
    return
  }
  func.func @transform_0(%arg0: i32) -> (i32, i32) {
    %c0_i32 = arith.constant 0 : i32
    %c0_i32_0 = arith.constant 0 : i32
    return %arg0, %c0_i32 : i32, i32
  }
  func.func @transform_1(%arg0: i32) -> (i32, i32) {
    %c0_i32 = arith.constant 0 : i32
    %c0_i32_0 = arith.constant 0 : i32
    %c0_i32_1 = arith.constant 0 : i32
    return %c0_i32, %c0_i32_0 : i32, i32
  }
  func.func @transform_2(%arg0: i32) -> (i32, i32) {
    %c0_i32 = arith.constant 0 : i32
    %c0_i32_0 = arith.constant 0 : i32
    return %arg0, %c0_i32 : i32, i32
  }
  func.func @transform_3(%arg0: i32) -> (i32, i32) {
    %c0_i32 = arith.constant 0 : i32
    %c0_i32_0 = arith.constant 0 : i32
    return %arg0, %c0_i32 : i32, i32
  }
}

module attributes {stable_mosaic.version = 11 : i64} {
  func.func @_gates2_last_kernel(%arg0: i32, %arg1: memref<32x288xbf16, #tpu.memory_space<vmem>>, %arg2: memref<288x32xbf16, #tpu.memory_space<vmem>>, %arg3: memref<16x16xbf16, #tpu.memory_space<vmem>>, %arg4: memref<32x16xf32, #tpu.memory_space<vmem>>, %arg5: memref<32x16xf32, #tpu.memory_space<vmem>>, %arg6: memref<32x16xf32, #tpu.memory_space<vmem>>) attributes {dimension_semantics = [#tpu.dimension_semantics<parallel>], iteration_bounds = array<i64: 1>, scalar_prefetch = 0 : i64, scratch_operands = 0 : i64, tpu.core_type = #tpu.core_type<tc>, window_params = [{transform_indices = @transform_0, window_bounds = array<i64: 32, 288>}, {pipeline_mode = #tpu.pipeline_mode<synchronous>, transform_indices = @transform_1, window_bounds = array<i64: 288, 32>}, {pipeline_mode = #tpu.pipeline_mode<synchronous>, transform_indices = @transform_2, window_bounds = array<i64: 16, 16>}, {transform_indices = @transform_3, window_bounds = array<i64: 32, 16>}, {transform_indices = @transform_4, window_bounds = array<i64: 32, 16>}, {transform_indices = @transform_5, window_bounds = array<i64: 32, 16>}]} {
    %c0 = arith.constant 0 : index
    %c0_0 = arith.constant 0 : index
    %0 = vector.load %arg1[%c0, %c0_0] : memref<32x288xbf16, #tpu.memory_space<vmem>>, vector<32x288xbf16>
    %c0_1 = arith.constant 0 : index
    %c0_2 = arith.constant 0 : index
    %1 = vector.load %arg2[%c0_1, %c0_2] : memref<288x32xbf16, #tpu.memory_space<vmem>>, vector<288x32xbf16>
    %cst = arith.constant dense<0.000000e+00> : vector<32x32xf32>
    %2 = tpu.matmul %0, %1, %cst {dimension_numbers = #tpu.dot_dimension_numbers<[1], [0], [0], [1], [0, 0, 1, 1], [], []>} : vector<32x288xbf16>, vector<288x32xbf16>, vector<32x32xf32> -> vector<32x32xf32>
    %c0_3 = arith.constant 0 : index
    %c0_4 = arith.constant 0 : index
    %3 = vector.load %arg4[%c0_3, %c0_4] : memref<32x16xf32, #tpu.memory_space<vmem>>, vector<32x16xf32>
    %4 = vector.extract_strided_slice %2 {offsets = [0, 0], sizes = [32, 16], strides = [1, 1]} : vector<32x32xf32> to vector<32x16xf32>
    %5 = arith.addf %3, %4 : vector<32x16xf32>
    %6 = arith.negf %5 : vector<32x16xf32>
    %7 = math.exp %6 : vector<32x16xf32>
    %cst_5 = arith.constant 1.000000e+00 : f32
    %8 = vector.broadcast %cst_5 : f32 to vector<32x16xf32>
    %9 = arith.addf %8, %7 : vector<32x16xf32>
    %10 = arith.divf %8, %9 : vector<32x16xf32>
    %11 = vector.extract_strided_slice %2 {offsets = [0, 16], sizes = [32, 16], strides = [1, 1]} : vector<32x32xf32> to vector<32x16xf32>
    %12 = math.tanh %11 : vector<32x16xf32>
    %13 = arith.mulf %10, %12 : vector<32x16xf32>
    %c0_6 = arith.constant 0 : index
    %c0_7 = arith.constant 0 : index
    %14 = vector.load %arg5[%c0_6, %c0_7] : memref<32x16xf32, #tpu.memory_space<vmem>>, vector<32x16xf32>
    tpu.vector_store %arg5[%c0_6, %c0_7], %13 {strides = array<i32>} : memref<32x16xf32, #tpu.memory_space<vmem>>, vector<32x16xf32>,
    %15 = arith.truncf %13 : vector<32x16xf32> to vector<32x16xbf16>
    %c0_8 = arith.constant 0 : index
    %c0_9 = arith.constant 0 : index
    %16 = vector.load %arg3[%c0_8, %c0_9] : memref<16x16xbf16, #tpu.memory_space<vmem>>, vector<16x16xbf16>
    %cst_10 = arith.constant dense<0.000000e+00> : vector<32x16xf32>
    %17 = tpu.matmul %15, %16, %cst_10 {dimension_numbers = #tpu.dot_dimension_numbers<[1], [0], [0], [1], [0, 0, 1, 1], [], []>} : vector<32x16xbf16>, vector<16x16xbf16>, vector<32x16xf32> -> vector<32x16xf32>
    %c0_11 = arith.constant 0 : index
    %c0_12 = arith.constant 0 : index
    %18 = vector.load %arg6[%c0_11, %c0_12] : memref<32x16xf32, #tpu.memory_space<vmem>>, vector<32x16xf32>
    tpu.vector_store %arg6[%c0_11, %c0_12], %17 {strides = array<i32>} : memref<32x16xf32, #tpu.memory_space<vmem>>, vector<32x16xf32>,
    return
  }
  func.func @transform_0(%arg0: i32) -> (i32, i32) {
    %c0_i32 = arith.constant 0 : i32
    %c0_i32_0 = arith.constant 0 : i32
    return %arg0, %c0_i32 : i32, i32
  }
  func.func @transform_1(%arg0: i32) -> (i32, i32) {
    %c0_i32 = arith.constant 0 : i32
    %c0_i32_0 = arith.constant 0 : i32
    %c0_i32_1 = arith.constant 0 : i32
    return %c0_i32, %c0_i32_0 : i32, i32
  }
  func.func @transform_2(%arg0: i32) -> (i32, i32) {
    %c0_i32 = arith.constant 0 : i32
    %c0_i32_0 = arith.constant 0 : i32
    %c0_i32_1 = arith.constant 0 : i32
    return %c0_i32, %c0_i32_0 : i32, i32
  }
  func.func @transform_3(%arg0: i32) -> (i32, i32) {
    %c0_i32 = arith.constant 0 : i32
    %c0_i32_0 = arith.constant 0 : i32
    return %arg0, %c0_i32 : i32, i32
  }
  func.func @transform_4(%arg0: i32) -> (i32, i32) {
    %c0_i32 = arith.constant 0 : i32
    %c0_i32_0 = arith.constant 0 : i32
    return %arg0, %c0_i32 : i32, i32
  }
  func.func @transform_5(%arg0: i32) -> (i32, i32) {
    %c0_i32 = arith.constant 0 : i32
    %c0_i32_0 = arith.constant 0 : i32
    return %arg0, %c0_i32 : i32, i32
  }
}

module attributes {stable_mosaic.version = 11 : i64} {
  func.func @_gates2_last_kernel(%arg0: i32, %arg1: memref<32x288xbf16, #tpu.memory_space<vmem>>, %arg2: memref<288x32xbf16, #tpu.memory_space<vmem>>, %arg3: memref<16x16xbf16, #tpu.memory_space<vmem>>, %arg4: memref<32x16xf32, #tpu.memory_space<vmem>>, %arg5: memref<32x16xf32, #tpu.memory_space<vmem>>, %arg6: memref<32x16xf32, #tpu.memory_space<vmem>>) attributes {dimension_semantics = [#tpu.dimension_semantics<parallel>], iteration_bounds = array<i64: 1>, scalar_prefetch = 0 : i64, scratch_operands = 0 : i64, tpu.core_type = #tpu.core_type<tc>, window_params = [{transform_indices = @transform_0, window_bounds = array<i64: 32, 288>}, {pipeline_mode = #tpu.pipeline_mode<synchronous>, transform_indices = @transform_1, window_bounds = array<i64: 288, 32>}, {pipeline_mode = #tpu.pipeline_mode<synchronous>, transform_indices = @transform_2, window_bounds = array<i64: 16, 16>}, {transform_indices = @transform_3, window_bounds = array<i64: 32, 16>}, {transform_indices = @transform_4, window_bounds = array<i64: 32, 16>}, {transform_indices = @transform_5, window_bounds = array<i64: 32, 16>}]} {
    %c0 = arith.constant 0 : index
    %c0_0 = arith.constant 0 : index
    %0 = vector.load %arg1[%c0, %c0_0] : memref<32x288xbf16, #tpu.memory_space<vmem>>, vector<32x288xbf16>
    %c0_1 = arith.constant 0 : index
    %c0_2 = arith.constant 0 : index
    %1 = vector.load %arg2[%c0_1, %c0_2] : memref<288x32xbf16, #tpu.memory_space<vmem>>, vector<288x32xbf16>
    %cst = arith.constant dense<0.000000e+00> : vector<32x32xf32>
    %2 = tpu.matmul %0, %1, %cst {dimension_numbers = #tpu.dot_dimension_numbers<[1], [0], [0], [1], [0, 0, 1, 1], [], []>} : vector<32x288xbf16>, vector<288x32xbf16>, vector<32x32xf32> -> vector<32x32xf32>
    %c0_3 = arith.constant 0 : index
    %c0_4 = arith.constant 0 : index
    %3 = vector.load %arg4[%c0_3, %c0_4] : memref<32x16xf32, #tpu.memory_space<vmem>>, vector<32x16xf32>
    %4 = vector.extract_strided_slice %2 {offsets = [0, 0], sizes = [32, 16], strides = [1, 1]} : vector<32x32xf32> to vector<32x16xf32>
    %5 = arith.addf %3, %4 : vector<32x16xf32>
    %6 = arith.negf %5 : vector<32x16xf32>
    %7 = math.exp %6 : vector<32x16xf32>
    %cst_5 = arith.constant 1.000000e+00 : f32
    %8 = vector.broadcast %cst_5 : f32 to vector<32x16xf32>
    %9 = arith.addf %8, %7 : vector<32x16xf32>
    %10 = arith.divf %8, %9 : vector<32x16xf32>
    %11 = vector.extract_strided_slice %2 {offsets = [0, 16], sizes = [32, 16], strides = [1, 1]} : vector<32x32xf32> to vector<32x16xf32>
    %12 = math.tanh %11 : vector<32x16xf32>
    %13 = arith.mulf %10, %12 : vector<32x16xf32>
    %c0_6 = arith.constant 0 : index
    %c0_7 = arith.constant 0 : index
    %14 = vector.load %arg5[%c0_6, %c0_7] : memref<32x16xf32, #tpu.memory_space<vmem>>, vector<32x16xf32>
    tpu.vector_store %arg5[%c0_6, %c0_7], %13 {strides = array<i32>} : memref<32x16xf32, #tpu.memory_space<vmem>>, vector<32x16xf32>,
    %15 = arith.truncf %13 : vector<32x16xf32> to vector<32x16xbf16>
    %c0_8 = arith.constant 0 : index
    %c0_9 = arith.constant 0 : index
    %16 = vector.load %arg3[%c0_8, %c0_9] : memref<16x16xbf16, #tpu.memory_space<vmem>>, vector<16x16xbf16>
    %cst_10 = arith.constant dense<0.000000e+00> : vector<32x16xf32>
    %17 = tpu.matmul %15, %16, %cst_10 {dimension_numbers = #tpu.dot_dimension_numbers<[1], [0], [0], [1], [0, 0, 1, 1], [], []>} : vector<32x16xbf16>, vector<16x16xbf16>, vector<32x16xf32> -> vector<32x16xf32>
    %c0_11 = arith.constant 0 : index
    %c0_12 = arith.constant 0 : index
    %18 = vector.load %arg6[%c0_11, %c0_12] : memref<32x16xf32, #tpu.memory_space<vmem>>, vector<32x16xf32>
    tpu.vector_store %arg6[%c0_11, %c0_12], %17 {strides = array<i32>} : memref<32x16xf32, #tpu.memory_space<vmem>>, vector<32x16xf32>,
    return
  }
  func.func @transform_0(%arg0: i32) -> (i32, i32) {
    %c0_i32 = arith.constant 0 : i32
    %c0_i32_0 = arith.constant 0 : i32
    return %arg0, %c0_i32 : i32, i32
  }
  func.func @transform_1(%arg0: i32) -> (i32, i32) {
    %c0_i32 = arith.constant 0 : i32
    %c0_i32_0 = arith.constant 0 : i32
    %c0_i32_1 = arith.constant 0 : i32
    return %c0_i32, %c0_i32_0 : i32, i32
  }
  func.func @transform_2(%arg0: i32) -> (i32, i32) {
    %c0_i32 = arith.constant 0 : i32
    %c0_i32_0 = arith.constant 0 : i32
    %c0_i32_1 = arith.constant 0 : i32
    return %c0_i32, %c0_i32_0 : i32, i32
  }
  func.func @transform_3(%arg0: i32) -> (i32, i32) {
    %c0_i32 = arith.constant 0 : i32
    %c0_i32_0 = arith.constant 0 : i32
    return %arg0, %c0_i32 : i32, i32
  }
  func.func @transform_4(%arg0: i32) -> (i32, i32) {
    %c0_i32 = arith.constant 0 : i32
    %c0_i32_0 = arith.constant 0 : i32
    return %arg0, %c0_i32 : i32, i32
  }
  func.func @transform_5(%arg0: i32) -> (i32, i32) {
    %c0_i32 = arith.constant 0 : i32
    %c0_i32_0 = arith.constant 0 : i32
    return %arg0, %c0_i32 : i32, i32
  }
}

module attributes {stable_mosaic.version = 11 : i64} {
  func.func @_sse_kernel(%arg0: i32, %arg1: memref<24x128xf32, #tpu.memory_space<vmem>>, %arg2: memref<24x128xf32, #tpu.memory_space<vmem>>, %arg3: memref<1x1xf32, #tpu.memory_space<vmem>>) attributes {dimension_semantics = [#tpu.dimension_semantics<arbitrary>], iteration_bounds = array<i64: 1>, scalar_prefetch = 0 : i64, scratch_operands = 0 : i64, tpu.core_type = #tpu.core_type<tc>, window_params = [{transform_indices = @transform_0, window_bounds = array<i64: 24, 128>}, {transform_indices = @transform_1, window_bounds = array<i64: 24, 128>}, {pipeline_mode = #tpu.pipeline_mode<synchronous>, transform_indices = @transform_2, window_bounds = array<i64: 1, 1>}]} {
    %c0_i32 = arith.constant 0 : i32
    %0 = arith.cmpi eq, %arg0, %c0_i32 : i32
    %1 = arith.extui %0 : i1 to i32
    %c0_i32_0 = arith.constant 0 : i32
    %2 = arith.cmpi ne, %1, %c0_i32_0 : i32
    scf.if %2 {
      %cst_8 = arith.constant 0.000000e+00 : f32
      %15 = vector.broadcast %cst_8 : f32 to vector<1x1xf32>
      %c0_9 = arith.constant 0 : index
      %c0_10 = arith.constant 0 : index
      %16 = vector.load %arg3[%c0_9, %c0_10] : memref<1x1xf32, #tpu.memory_space<vmem>>, vector<1x1xf32>
      tpu.vector_store %arg3[%c0_9, %c0_10], %15 {strides = array<i32>} : memref<1x1xf32, #tpu.memory_space<vmem>>, vector<1x1xf32>,
    } else {
    }
    %c0 = arith.constant 0 : index
    %c0_1 = arith.constant 0 : index
    %3 = vector.load %arg1[%c0, %c0_1] : memref<24x128xf32, #tpu.memory_space<vmem>>, vector<24x128xf32>
    %c0_2 = arith.constant 0 : index
    %c0_3 = arith.constant 0 : index
    %4 = vector.load %arg2[%c0_2, %c0_3] : memref<24x128xf32, #tpu.memory_space<vmem>>, vector<24x128xf32>
    %5 = arith.subf %3, %4 : vector<24x128xf32>
    %c0_4 = arith.constant 0 : index
    %c0_5 = arith.constant 0 : index
    %6 = vector.load %arg3[%c0_4, %c0_5] : memref<1x1xf32, #tpu.memory_space<vmem>>, vector<1x1xf32>
    %7 = arith.mulf %5, %5 : vector<24x128xf32>
    %8 = vector.shape_cast %7 : vector<24x128xf32> to vector<1x24x128xf32>
    %cst = arith.constant dense<0.000000e+00> : vector<1xf32>
    %9 = vector.multi_reduction <add>, %8, %cst [1, 2] : vector<1x24x128xf32> to vector<1xf32>
    %10 = vector.shape_cast %9 : vector<1xf32> to vector<1x1x1xf32>
    %11 = vector.extract %10[0, 0, 0] : f32 from vector<1x1x1xf32>
    %12 = vector.broadcast %11 : f32 to vector<1x1xf32>
    %13 = arith.addf %6, %12 : vector<1x1xf32>
    %c0_6 = arith.constant 0 : index
    %c0_7 = arith.constant 0 : index
    %14 = vector.load %arg3[%c0_6, %c0_7] : memref<1x1xf32, #tpu.memory_space<vmem>>, vector<1x1xf32>
    tpu.vector_store %arg3[%c0_6, %c0_7], %13 {strides = array<i32>} : memref<1x1xf32, #tpu.memory_space<vmem>>, vector<1x1xf32>,
    return
  }
  func.func @transform_0(%arg0: i32) -> (i32, i32) {
    %c0_i32 = arith.constant 0 : i32
    %c0_i32_0 = arith.constant 0 : i32
    return %arg0, %c0_i32 : i32, i32
  }
  func.func @transform_1(%arg0: i32) -> (i32, i32) {
    %c0_i32 = arith.constant 0 : i32
    %c0_i32_0 = arith.constant 0 : i32
    return %arg0, %c0_i32 : i32, i32
  }
  func.func @transform_2(%arg0: i32) -> (i32, i32) {
    %c0_i32 = arith.constant 0 : i32
    %c0_i32_0 = arith.constant 0 : i32
    %c0_i32_1 = arith.constant 0 : i32
    return %c0_i32, %c0_i32_0 : i32, i32
  }
}

</mosaic_0001>

<llo_original>
// kernel: _lambda_.22
$region0: #{_lambda_.22}
  #allocation0 [shape = 'u32[]', space=smem, size = 0x4, offset = 0x4, fixed_abs, tag = 'smem constant byte address 0x4 - core index']
  #allocation1 [shape = 'u32[72,128]{1,0:T(1,128)}', space=vmem, size = 0x9000, scoped, tag = 'internal scratch']
  %s0 = inlined_call_operand.vmem [shape: bf16[32,288], index: 0, kind: input, shape index: {}]
  %s1 = inlined_call_operand.vmem [shape: bf16[288,32], index: 1, kind: input, shape index: {}]
  %s2 = inlined_call_operand.vmem [shape: f32[32,16], index: 2, kind: input, shape index: {}]
  %s3 = inlined_call_operand.vmem [shape: f32[32,16], index: 3, kind: output, shape index: {}]
  %s4 = sld [smem:[#allocation0]]
  $region22: #{_lambda_.22} parent=0
    _
  %s6 = ssub.s32 1, %s4
  %s7 = scalar_select 0, %s6, %s4
  // Predicated region
  $region2: #{_lambda_.22} parent=0 // pred_check
    _
  $region3: #{_lambda_.22} parent=0 // pred_check_branch
    %9 = sbr.rel (0) target = $region5
  $region4: #{_lambda_.22} parent=0 // pred_region
    _
  $region5: #{_lambda_.22} parent=0 // pred_fallthru
    _
  // Predicated region
  $region6: #{_lambda_.22} parent=0 // pred_check
    _
  $region7: #{_lambda_.22} parent=0 // pred_check_branch
    %11 = sbr.rel (0) target = $region9
  $region8: #{_lambda_.22} parent=0 // pred_region
    _
  $region9: #{_lambda_.22} parent=0 // pred_fallthru
    _
  // Predicated region
  $region10: #{_lambda_.22} parent=0 // pred_check
    _
  $region11: #{_lambda_.22} parent=0 // pred_check_branch
    %13 = sbr.rel (0) target = $region13
  $region12: #{_lambda_.22} parent=0 // pred_region
    _
  $region13: #{_lambda_.22} parent=0 // pred_fallthru
    _
  %v15 = vld [vmem:[%s0] sm:$0xff]
  %v16 = vld [vmem:[%s0 + $0x8] sm:$0xf]
  %v17 = vld [vmem:[%s0 + $0xc] sm:$0xff]
  %v18 = vld [vmem:[%s0 + $0x14] sm:$0xf]
  %v19 = vld [vmem:[%s0 + $0x18] sm:$0xff]
  %v20 = vld [vmem:[%s0 + $0x20] sm:$0xf]
  %v21 = vld [vmem:[%s0 + $0x24] sm:$0xff]
  %v22 = vld [vmem:[%s0 + $0x2c] sm:$0xf]
  %v23 = vld [vmem:[%s1] sm:$0xf]
  %v24 = vld [vmem:[%s1 + $0x4] sm:$0xf]
  %v25 = vld [vmem:[%s1 + $0x8] sm:$0xf]
  %v26 = vld [vmem:[%s1 + $0xc] sm:$0xf]
  %v27 = vld [vmem:[%s1 + $0x10] sm:$0xf]
  %v28 = vld [vmem:[%s1 + $0x14] sm:$0xf]
  %v29 = vld [vmem:[%s1 + $0x18] sm:$0xf]
  %v30 = vld [vmem:[%s1 + $0x1c] sm:$0xf]
  %v31 = vld [vmem:[%s1 + $0x20] sm:$0xf]
  %v32 = vld [vmem:[%s1 + $0x24] sm:$0xf]
  %v33 = vld [vmem:[%s1 + $0x28] sm:$0xf]
  %v34 = vld [vmem:[%s1 + $0x2c] sm:$0xf]
  %v35 = vld [vmem:[%s1 + $0x30] sm:$0xf]
  %v36 = vld [vmem:[%s1 + $0x34] sm:$0xf]
  %v37 = vld [vmem:[%s1 + $0x38] sm:$0xf]
  %v38 = vld [vmem:[%s1 + $0x3c] sm:$0xf]
  %v39 = vld [vmem:[%s1 + $0x40] sm:$0xf]
  %v40 = vld [vmem:[%s1 + $0x44] sm:$0xf]
  %v41 = vld [vmem:[%s1 + $0x48] sm:$0xf]
  %v42 = vld [vmem:[%s1 + $0x4c] sm:$0xf]
  %v43 = vld [vmem:[%s1 + $0x50] sm:$0xf]
  %v44 = vld [vmem:[%s1 + $0x54] sm:$0xf]
  %v45 = vld [vmem:[%s1 + $0x58] sm:$0xf]
  %v46 = vld [vmem:[%s1 + $0x5c] sm:$0xf]
  %v47 = vld [vmem:[%s1 + $0x60] sm:$0xf]
  %v48 = vld [vmem:[%s1 + $0x64] sm:$0xf]
  %v49 = vld [vmem:[%s1 + $0x68] sm:$0xf]
  %v50 = vld [vmem:[%s1 + $0x6c] sm:$0xf]
  %v51 = vld [vmem:[%s1 + $0x70] sm:$0xf]
  %v52 = vld [vmem:[%s1 + $0x74] sm:$0xf]
  %v53 = vld [vmem:[%s1 + $0x78] sm:$0xf]
  %v54 = vld [vmem:[%s1 + $0x7c] sm:$0xf]
  %v55 = vld [vmem:[%s1 + $0x80] sm:$0xf]
  %v56 = vld [vmem:[%s1 + $0x84] sm:$0xf]
  %v57 = vld [vmem:[%s1 + $0x88] sm:$0xf]
  %v58 = vld [vmem:[%s1 + $0x8c] sm:$0xf]
  %v67 = vunpack.c.l.b16 %v15
  %v68 = vunpack.c.h.b16 %v15
  %v69 = vunpack.c.l.b16 %v16
  %v70 = vunpack.c.l.b16 %v17
  %v71 = vunpack.c.h.b16 %v17
  %v72 = vunpack.c.l.b16 %v18
  %v73 = vunpack.c.l.b16 %v19
  %v74 = vunpack.c.h.b16 %v19
  %v75 = vunpack.c.l.b16 %v20
  %v76 = vunpack.c.l.b16 %v21
  %v77 = vunpack.c.h.b16 %v21
  %v78 = vunpack.c.l.b16 %v22
  %v79 = vpack.c.b16 %v70, %v67
  %v80 = vpack.c.b16 %v71, %v68
  %v81 = vpack.c.b16 %v72, %v69
  %v82 = vpack.c.b16 %v76, %v73
  %v83 = vpack.c.b16 %v77, %v74
  %v84 = vpack.c.b16 %v78, %v75
  %v125 = vunpack.c.l.b16 %v23
  %v126 = vunpack.c.l.b16 %v24
  %v127 = vunpack.c.l.b16 %v25
  %v128 = vunpack.c.l.b16 %v26
  %v129 = vunpack.c.l.b16 %v27
  %v130 = vunpack.c.l.b16 %v28
  %v131 = vunpack.c.l.b16 %v29
  %v132 = vunpack.c.l.b16 %v30
  %v133 = vunpack.c.l.b16 %v31
  %v134 = vunpack.c.l.b16 %v32
  %v135 = vunpack.c.l.b16 %v33
  %v136 = vunpack.c.l.b16 %v34
  %v137 = vunpack.c.l.b16 %v35
  %v138 = vunpack.c.l.b16 %v36
  %v139 = vunpack.c.l.b16 %v37
  %v140 = vunpack.c.l.b16 %v38
  %v141 = vunpack.c.l.b16 %v39
  %v142 = vunpack.c.l.b16 %v40
  %v143 = vunpack.c.l.b16 %v41
  %v144 = vunpack.c.l.b16 %v42
  %v145 = vunpack.c.l.b16 %v43
  %v146 = vunpack.c.l.b16 %v44
  %v147 = vunpack.c.l.b16 %v45
  %v148 = vunpack.c.l.b16 %v46
  %v149 = vunpack.c.l.b16 %v47
  %v150 = vunpack.c.l.b16 %v48
  %v151 = vunpack.c.l.b16 %v49
  %v152 = vunpack.c.l.b16 %v50
  %v153 = vunpack.c.l.b16 %v51
  %v154 = vunpack.c.l.b16 %v52
  %v155 = vunpack.c.l.b16 %v53
  %v156 = vunpack.c.l.b16 %v54
  %v157 = vunpack.c.l.b16 %v55
  %v158 = vunpack.c.l.b16 %v56
  %v159 = vunpack.c.l.b16 %v57
  %v160 = vunpack.c.l.b16 %v58
  %v161 = vpack.c.b16 %v126, %v125
  %v162 = vpack.c.b16 %v128, %v127
  %v163 = vpack.c.b16 %v130, %v129
  %v164 = vpack.c.b16 %v132, %v131
  %v165 = vpack.c.b16 %v134, %v133
  %v166 = vpack.c.b16 %v136, %v135
  %v167 = vpack.c.b16 %v138, %v137
  %v168 = vpack.c.b16 %v140, %v139
  %v169 = vpack.c.b16 %v142, %v141
  %v170 = vpack.c.b16 %v144, %v143
  %v171 = vpack.c.b16 %v146, %v145
  %v172 = vpack.c.b16 %v148, %v147
  %v173 = vpack.c.b16 %v150, %v149
  %v174 = vpack.c.b16 %v152, %v151
  %v175 = vpack.c.b16 %v154, %v153
  %v176 = vpack.c.b16 %v156, %v155
  %v177 = vpack.c.b16 %v158, %v157
  %v178 = vpack.c.b16 %v160, %v159
  %vm197 = vcmask 261120
  %v199 = vsel %vm197, %v81, 0
  %v202 = vsel %vm197, %v84, 0
  %204 = vmatpush.bf16.msra.mxu0 %v168
  %205 = vmatpush.bf16.msra.mxu0 %v167
  %206 = vmatpush.bf16.msra.mxu0 %v166
  %207 = vmatpush.bf16.msra.mxu0 %v165
  %208 = vmatpush.bf16.msra.mxu0 %v164
  %209 = vmatpush.bf16.msra.mxu0 %v163
  %210 = vmatpush.bf16.msra.mxu0 %v162
  %211 = vmatpush.bf16.msra.mxu0 %v161
  %212 = vmatmul.bf16.gmra.mxu0 %v79
  %v213 = vpop.f32.mrf.mxu0
  %v214 = vadd.f32 0.0, %v213
  %v215 = vpop.f32.mrf.mxu0
  %v216 = vadd.f32 0.0, %v215
  %217 = vmatmul.bf16.gmra.mxu0 %v82
  %v218 = vpop.f32.mrf.mxu0
  %v219 = vadd.f32 0.0, %v218
  %v220 = vpop.f32.mrf.mxu0
  %v221 = vadd.f32 0.0, %v220
  %222 = vdwg.mxu0
  %223 = vmatpush.bf16.msra.mxu0 %v176
  %224 = vmatpush.bf16.msra.mxu0 %v175
  %225 = vmatpush.bf16.msra.mxu0 %v174
  %226 = vmatpush.bf16.msra.mxu0 %v173
  %227 = vmatpush.bf16.msra.mxu0 %v172
  %228 = vmatpush.bf16.msra.mxu0 %v171
  %229 = vmatpush.bf16.msra.mxu0 %v170
  %230 = vmatpush.bf16.msra.mxu0 %v169
  %231 = vmatmul.bf16.gmra.mxu0 %v80
  %v232 = vpop.f32.mrf.mxu0
  %v233 = vadd.f32 %v214, %v232
  %v234 = vpop.f32.mrf.mxu0
  %v235 = vadd.f32 %v216, %v234
  %236 = vmatmul.bf16.gmra.mxu0 %v83
  %v237 = vpop.f32.mrf.mxu0
  %v238 = vadd.f32 %v219, %v237
  %v239 = vpop.f32.mrf.mxu0
  %v240 = vadd.f32 %v221, %v239
  %241 = vdwg.mxu0
  %242 = vmatpush.bf16.msra.mxu0 0
  %243 = vmatpush.bf16.msra.mxu0 0
  %244 = vmatpush.bf16.msra.mxu0 0
  %245 = vmatpush.bf16.msra.mxu0 0
  %246 = vmatpush.bf16.msra.mxu0 0
  %247 = vmatpush.bf16.msra.mxu0 0
  %248 = vmatpush.bf16.msra.mxu0 %v178
  %249 = vmatpush.bf16.msra.mxu0 %v177
  %250 = vmatmul.bf16.gmra.mxu0 %v199
  %v251 = vpop.f32.mrf.mxu0
  %v252 = vadd.f32 %v233, %v251
  %v253 = vpop.f32.mrf.mxu0
  %v254 = vadd.f32 %v235, %v253
  %255 = vmatmul.bf16.gmra.mxu0 %v202
  %v256 = vpop.f32.mrf.mxu0
  %v257 = vadd.f32 %v238, %v256
  %v258 = vpop.f32.mrf.mxu0
  %v259 = vadd.f32 %v240, %v258
  %260 = vdwg.mxu0
  %v261 = vld [vmem:[%s2] sm:$0xff]
  %v262 = vld [vmem:[%s2 + $0x8] sm:$0xff]
  %v263 = vld [vmem:[%s2 + $0x10] sm:$0xff]
  %v264 = vld [vmem:[%s2 + $0x18] sm:$0xff]
  %v265 = vadd.f32 %v261, %v252
  %v266 = vadd.f32 %v262, %v254
  %v267 = vadd.f32 %v263, %v257
  %v268 = vadd.f32 %v264, %v259
  %v269 = vxor.u32 %v265, 2147483648
  %v270 = vxor.u32 %v266, 2147483648
  %v271 = vxor.u32 %v267, 2147483648
  %v272 = vxor.u32 %v268, 2147483648
  %v273 = vmul.f32 %v269, 1.442695
  %v274 = vpow.pop %v273
  %v275 = vmul.f32 %v270, 1.442695
  %v276 = vpow.pop %v275
  %v277 = vmul.f32 %v271, 1.442695
  %v278 = vpow.pop %v277
  %v279 = vmul.f32 %v272, 1.442695
  %v280 = vpow.pop %v279
  %v281 = vadd.f32 %v274, 1.0
  %v282 = vadd.f32 %v276, 1.0
  %v283 = vadd.f32 %v278, 1.0
  %v284 = vadd.f32 %v280, 1.0
  %v285 = vrcp.pop %v281
  %v286 = vmul.f32 %v281, %v285
  %v287 = vsub.f32 1.0, %v286
  %v288 = vmul.f32 %v285, %v287
  %v289 = vadd.f32 %v285, %v288
  %vm290 = vweird.f32 %v281
  %vm291 = vweird.f32 %v285
  %vm292 = vmor %vm290, %vm291
  %v293 = vsel %vm292, %v285, %v289
  %v294 = vand.u32 2147483647, %v281
  %vm295 = vcmp.eq.f32.partialorder %v294, 8.507059e+37
  %v296 = vand.u32 %v281, 2147483648
  %v297 = vor.u32 1.1754944e-38, %v296
  %v298 = vsel %vm295, %v297, %v293
  %v299 = vmul.f32 1.0, %v298
  %v300 = vrcp.pop %v282
  %v301 = vmul.f32 %v282, %v300
  %v302 = vsub.f32 1.0, %v301
  %v303 = vmul.f32 %v300, %v302
  %v304 = vadd.f32 %v300, %v303
  %vm305 = vweird.f32 %v282
  %vm306 = vweird.f32 %v300
  %vm307 = vmor %vm305, %vm306
  %v308 = vsel %vm307, %v300, %v304
  %v309 = vand.u32 2147483647, %v282
  %vm310 = vcmp.eq.f32.partialorder %v309, 8.507059e+37
  %v311 = vand.u32 %v282, 2147483648
  %v312 = vor.u32 1.1754944e-38, %v311
  %v313 = vsel %vm310, %v312, %v308
  %v314 = vmul.f32 1.0, %v313
  %v315 = vrcp.pop %v283
  %v316 = vmul.f32 %v283, %v315
  %v317 = vsub.f32 1.0, %v316
  %v318 = vmul.f32 %v315, %v317
  %v319 = vadd.f32 %v315, %v318
  %vm320 = vweird.f32 %v283
  %vm321 = vweird.f32 %v315
  %vm322 = vmor %vm320, %vm321
  %v323 = vsel %vm322, %v315, %v319
  %v324 = vand.u32 2147483647, %v283
  %vm325 = vcmp.eq.f32.partialorder %v324, 8.507059e+37
  %v326 = vand.u32 %v283, 2147483648
  %v327 = vor.u32 1.1754944e-38, %v326
  %v328 = vsel %vm325, %v327, %v323
  %v329 = vmul.f32 1.0, %v328
  %v330 = vrcp.pop %v284
  %v331 = vmul.f32 %v284, %v330
  %v332 = vsub.f32 1.0, %v331
  %v333 = vmul.f32 %v330, %v332
  %v334 = vadd.f32 %v330, %v333
  %vm335 = vweird.f32 %v284
  %vm336 = vweird.f32 %v330
  %vm337 = vmor %vm335, %vm336
  %v338 = vsel %vm337, %v330, %v334
  %v339 = vand.u32 2147483647, %v284
  %vm340 = vcmp.eq.f32.partialorder %v339, 8.507059e+37
  %v341 = vand.u32 %v284, 2147483648
  %v342 = vor.u32 1.1754944e-38, %v341
  %v343 = vsel %vm340, %v342, %v338
  %v344 = vmul.f32 1.0, %v343
  %v345 = vtanh.pop %v252
  %v346 = vtanh.pop %v254
  %v347 = vtanh.pop %v257
  %v348 = vtanh.pop %v259
  %353 = vrot.lane.b32.xlu0 %v345, 112
  %v354 = vpop.permute.xlu0 %353
  %355 = vrot.lane.b32.xlu0 %v346, 112
  %v356 = vpop.permute.xlu0 %355
  %357 = vrot.lane.b32.xlu0 %v347, 112
  %v358 = vpop.permute.xlu0 %357
  %359 = vrot.lane.b32.xlu0 %v348, 112
  %v360 = vpop.permute.xlu0 %359
  %v365 = vmul.f32 %v299, %v354
  %v366 = vmul.f32 %v314, %v356
  %v367 = vmul.f32 %v329, %v358
  %v368 = vmul.f32 %v344, %v360
  %vm369 = vcmask 130048
  %370 = vst.msk [vmem:[%s3] sm:$0xff] %vm369, %v365
  %371 = vst.msk [vmem:[%s3 + $0x8] sm:$0xff] %vm369, %v366
  %372 = vst.msk [vmem:[%s3 + $0x10] sm:$0xff] %vm369, %v367
  %373 = vst.msk [vmem:[%s3 + $0x18] sm:$0xff] %vm369, %v368
  // Predicated region
  $region14: #{_lambda_.22} parent=0 // pred_check
    _
  $region15: #{_lambda_.22} parent=0 // pred_check_branch
    %375 = sbr.rel (0) target = $region17
  $region16: #{_lambda_.22} parent=0 // pred_region
    _
  $region17: #{_lambda_.22} parent=0 // pred_fallthru
    _
  // Predicated region
  $region18: #{_lambda_.22} parent=0 // pred_check
    _
  $region19: #{_lambda_.22} parent=0 // pred_check_branch
    %377 = sbr.rel (0) target = $region21
  $region20: #{_lambda_.22} parent=0 // pred_region
    _
  $region21: #{_lambda_.22} parent=0 // pred_fallthru
    _

// kernel: _lambda_.21
$region0: #{_lambda_.21}
  #allocation0 [shape = 'u32[]', space=smem, size = 0x4, offset = 0x4, fixed_abs, tag = 'smem constant byte address 0x4 - core index']
  #allocation1 [shape = 'u32[72,128]{1,0:T(1,128)}', space=vmem, size = 0x9000, scoped, tag = 'internal scratch']
  %s0 = inlined_call_operand.vmem [shape: bf16[32,144], index: 0, kind: input, shape index: {}]
  %s1 = inlined_call_operand.vmem [shape: bf16[32,144], index: 1, kind: input, shape index: {}, may-alias: {1,2}]
  %s2 = inlined_call_operand.vmem [shape: bf16[32,144], index: 2, kind: input, shape index: {}, may-alias: {1,2}]
  %s3 = inlined_call_operand.vmem [shape: bf16[144,112], index: 3, kind: input, shape index: {}]
  %s4 = inlined_call_operand.vmem [shape: bf16[144,64], index: 4, kind: input, shape index: {}]
  %s5 = inlined_call_operand.vmem [shape: bf16[144,48], index: 5, kind: input, shape index: {}]
  %s6 = inlined_call_operand.vmem [shape: f32[32,16], index: 6, kind: input, shape index: {}, may-alias: {6,7}]
  %s7 = inlined_call_operand.vmem [shape: f32[32,16], index: 7, kind: input, shape index: {}, may-alias: {6,7}]
  %s8 = inlined_call_operand.vmem [shape: f32[32,48], index: 8, kind: output, shape index: {}]
  %s9 = sld [smem:[#allocation0]]
  $region42: #{_lambda_.21} parent=0
    _
  %s11 = ssub.s32 1, %s9
  %s12 = scalar_select 0, %s11, %s9
  // Predicated region
  $region2: #{_lambda_.21} parent=0 // pred_check
    _
  $region3: #{_lambda_.21} parent=0 // pred_check_branch
    %14 = sbr.rel (0) target = $region5
  $region4: #{_lambda_.21} parent=0 // pred_region
    _
  $region5: #{_lambda_.21} parent=0 // pred_fallthru
    _
  // Predicated region
  $region6: #{_lambda_.21} parent=0 // pred_check
    _
  $region7: #{_lambda_.21} parent=0 // pred_check_branch
    %16 = sbr.rel (0) target = $region9
  $region8: #{_lambda_.21} parent=0 // pred_region
    _
  $region9: #{_lambda_.21} parent=0 // pred_fallthru
    _
  // Predicated region
  $region10: #{_lambda_.21} parent=0 // pred_check
    _
  $region11: #{_lambda_.21} parent=0 // pred_check_branch
    %18 = sbr.rel (0) target = $region13
  $region12: #{_lambda_.21} parent=0 // pred_region
    _
  $region13: #{_lambda_.21} parent=0 // pred_fallthru
    _
  // Predicated region
  $region14: #{_lambda_.21} parent=0 // pred_check
    _
  $region15: #{_lambda_.21} parent=0 // pred_check_branch
    %20 = sbr.rel (0) target = $region17
  $region16: #{_lambda_.21} parent=0 // pred_region
    _
  $region17: #{_lambda_.21} parent=0 // pred_fallthru
    _
  // Predicated region
  $region18: #{_lambda_.21} parent=0 // pred_check
    _
  $region19: #{_lambda_.21} parent=0 // pred_check_branch
    %22 = sbr.rel (0) target = $region21
  $region20: #{_lambda_.21} parent=0 // pred_region
    _
  $region21: #{_lambda_.21} parent=0 // pred_fallthru
    _
  // Predicated region
  $region22: #{_lambda_.21} parent=0 // pred_check
    _
  $region23: #{_lambda_.21} parent=0 // pred_check_branch
    %24 = sbr.rel (0) target = $region25
  $region24: #{_lambda_.21} parent=0 // pred_region
    _
  $region25: #{_lambda_.21} parent=0 // pred_fallthru
    _
  // Predicated region
  $region26: #{_lambda_.21} parent=0 // pred_check
    _
  $region27: #{_lambda_.21} parent=0 // pred_check_branch
    %26 = sbr.rel (0) target = $region29
  $region28: #{_lambda_.21} parent=0 // pred_region
    _
  $region29: #{_lambda_.21} parent=0 // pred_fallthru
    _
  // Predicated region
  $region30: #{_lambda_.21} parent=0 // pred_check
    _
  $region31: #{_lambda_.21} parent=0 // pred_check_branch
    %28 = sbr.rel (0) target = $region33
  $region32: #{_lambda_.21} parent=0 // pred_region
    _
  $region33: #{_lambda_.21} parent=0 // pred_fallthru
    _
  %v30 = vld [vmem:[%s0] sm:$0xff]
  %v31 = vld [vmem:[%s0 + $0x8] sm:$0xff]
  %v32 = vld [vmem:[%s0 + $0x10] sm:$0xff]
  %v33 = vld [vmem:[%s0 + $0x18] sm:$0xff]
  %v34 = vld [vmem:[%s3] sm:$0xf]
  %v35 = vld [vmem:[%s3 + $0x4] sm:$0xf]
  %v36 = vld [vmem:[%s3 + $0x8] sm:$0xf]
  %v37 = vld [vmem:[%s3 + $0xc] sm:$0xf]
  %v38 = vld [vmem:[%s3 + $0x10] sm:$0xf]
  %v39 = vld [vmem:[%s3 + $0x14] sm:$0xf]
  %v40 = vld [vmem:[%s3 + $0x18] sm:$0xf]
  %v41 = vld [vmem:[%s3 + $0x1c] sm:$0xf]
  %v42 = vld [vmem:[%s3 + $0x20] sm:$0xf]
  %v43 = vld [vmem:[%s3 + $0x24] sm:$0xf]
  %v44 = vld [vmem:[%s3 + $0x28] sm:$0xf]
  %v45 = vld [vmem:[%s3 + $0x2c] sm:$0xf]
  %v46 = vld [vmem:[%s3 + $0x30] sm:$0xf]
  %v47 = vld [vmem:[%s3 + $0x34] sm:$0xf]
  %v48 = vld [vmem:[%s3 + $0x38] sm:$0xf]
  %v49 = vld [vmem:[%s3 + $0x3c] sm:$0xf]
  %v50 = vld [vmem:[%s3 + $0x40] sm:$0xf]
  %v51 = vld [vmem:[%s3 + $0x44] sm:$0xf]
  %v56 = vunpack.c.l.b16 %v30
  %v57 = vunpack.c.h.b16 %v30
  %v58 = vunpack.c.l.b16 %v31
  %v59 = vunpack.c.h.b16 %v31
  %v60 = vunpack.c.l.b16 %v32
  %v61 = vunpack.c.h.b16 %v32
  %v62 = vunpack.c.l.b16 %v33
  %v63 = vunpack.c.h.b16 %v33
  %v64 = vpack.c.b16 %v58, %v56
  %v65 = vpack.c.b16 %v59, %v57
  %v66 = vpack.c.b16 %v62, %v60
  %v67 = vpack.c.b16 %v63, %v61
  %v88 = vunpack.c.l.b16 %v34
  %v89 = vunpack.c.l.b16 %v35
  %v90 = vunpack.c.l.b16 %v36
  %v91 = vunpack.c.l.b16 %v37
  %v92 = vunpack.c.l.b16 %v38
  %v93 = vunpack.c.l.b16 %v39
  %v94 = vunpack.c.l.b16 %v40
  %v95 = vunpack.c.l.b16 %v41
  %v96 = vunpack.c.l.b16 %v42
  %v97 = vunpack.c.l.b16 %v43
  %v98 = vunpack.c.l.b16 %v44
  %v99 = vunpack.c.l.b16 %v45
  %v100 = vunpack.c.l.b16 %v46
  %v101 = vunpack.c.l.b16 %v47
  %v102 = vunpack.c.l.b16 %v48
  %v103 = vunpack.c.l.b16 %v49
  %v104 = vunpack.c.l.b16 %v50
  %v105 = vunpack.c.l.b16 %v51
  %v106 = vpack.c.b16 %v89, %v88
  %v107 = vpack.c.b16 %v91, %v90
  %v108 = vpack.c.b16 %v93, %v92
  %v109 = vpack.c.b16 %v95, %v94
  %v110 = vpack.c.b16 %v97, %v96
  %v111 = vpack.c.b16 %v99, %v98
  %v112 = vpack.c.b16 %v101, %v100
  %v113 = vpack.c.b16 %v103, %v102
  %v114 = vpack.c.b16 %v105, %v104
  %vm124 = vcmask 130048
  %v126 = vsel %vm124, %v65, 0
  %v129 = vsel %vm124, %v67, 0
  %131 = vmatpush.bf16.msra.mxu0 %v113
  %132 = vmatpush.bf16.msra.mxu0 %v112
  %133 = vmatpush.bf16.msra.mxu0 %v111
  %134 = vmatpush.bf16.msra.mxu0 %v110
  %135 = vmatpush.bf16.msra.mxu0 %v109
  %136 = vmatpush.bf16.msra.mxu0 %v108
  %137 = vmatpush.bf16.msra.mxu0 %v107
  %138 = vmatpush.bf16.msra.mxu0 %v106
  %139 = vmatmul.bf16.gmra.mxu0 %v64
  %v140 = vpop.f32.mrf.mxu0
  %v141 = vadd.f32 0.0, %v140
  %v142 = vpop.f32.mrf.mxu0
  %v143 = vadd.f32 0.0, %v142
  %144 = vmatmul.bf16.gmra.mxu0 %v66
  %v145 = vpop.f32.mrf.mxu0
  %v146 = vadd.f32 0.0, %v145
  %v147 = vpop.f32.mrf.mxu0
  %v148 = vadd.f32 0.0, %v147
  %149 = vdwg.mxu0
  %150 = vmatpush.bf16.msra.mxu0 0
  %151 = vmatpush.bf16.msra.mxu0 0
  %152 = vmatpush.bf16.msra.mxu0 0
  %153 = vmatpush.bf16.msra.mxu0 0
  %154 = vmatpush.bf16.msra.mxu0 0
  %155 = vmatpush.bf16.msra.mxu0 0
  %156 = vmatpush.bf16.msra.mxu0 0
  %157 = vmatpush.bf16.msra.mxu0 %v114
  %158 = vmatmul.bf16.gmra.mxu0 %v126
  %v159 = vpop.f32.mrf.mxu0
  %v160 = vadd.f32 %v141, %v159
  %v161 = vpop.f32.mrf.mxu0
  %v162 = vadd.f32 %v143, %v161
  %163 = vmatmul.bf16.gmra.mxu0 %v129
  %v164 = vpop.f32.mrf.mxu0
  %v165 = vadd.f32 %v146, %v164
  %v166 = vpop.f32.mrf.mxu0
  %v167 = vadd.f32 %v148, %v166
  %168 = vdwg.mxu0
  %v169 = vld [vmem:[%s1] sm:$0xff]
  %v170 = vld [vmem:[%s1 + $0x8] sm:$0xff]
  %v171 = vld [vmem:[%s1 + $0x10] sm:$0xff]
  %v172 = vld [vmem:[%s1 + $0x18] sm:$0xff]
  %v173 = vld [vmem:[%s4] sm:$0xf]
  %v174 = vld [vmem:[%s4 + $0x4] sm:$0xf]
  %v175 = vld [vmem:[%s4 + $0x8] sm:$0xf]
  %v176 = vld [vmem:[%s4 + $0xc] sm:$0xf]
  %v177 = vld [vmem:[%s4 + $0x10] sm:$0xf]
  %v178 = vld [vmem:[%s4 + $0x14] sm:$0xf]
  %v179 = vld [vmem:[%s4 + $0x18] sm:$0xf]
  %v180 = vld [vmem:[%s4 + $0x1c] sm:$0xf]
  %v181 = vld [vmem:[%s4 + $0x20] sm:$0xf]
  %v182 = vld [vmem:[%s4 + $0x24] sm:$0xf]
  %v183 = vld [vmem:[%s4 + $0x28] sm:$0xf]
  %v184 = vld [vmem:[%s4 + $0x2c] sm:$0xf]
  %v185 = vld [vmem:[%s4 + $0x30] sm:$0xf]
  %v186 = vld [vmem:[%s4 + $0x34] sm:$0xf]
  %v187 = vld [vmem:[%s4 + $0x38] sm:$0xf]
  %v188 = vld [vmem:[%s4 + $0x3c] sm:$0xf]
  %v189 = vld [vmem:[%s4 + $0x40] sm:$0xf]
  %v190 = vld [vmem:[%s4 + $0x44] sm:$0xf]
  %v195 = vunpack.c.l.b16 %v169
  %v196 = vunpack.c.h.b16 %v169
  %v197 = vunpack.c.l.b16 %v170
  %v198 = vunpack.c.h.b16 %v170
  %v199 = vunpack.c.l.b16 %v171
  %v200 = vunpack.c.h.b16 %v171
  %v201 = vunpack.c.l.b16 %v172
  %v202 = vunpack.c.h.b16 %v172
  %v203 = vpack.c.b16 %v197, %v195
  %v204 = vpack.c.b16 %v198, %v196
  %v205 = vpack.c.b16 %v201, %v199
  %v206 = vpack.c.b16 %v202, %v200
  %v227 = vunpack.c.l.b16 %v173
  %v228 = vunpack.c.l.b16 %v174
  %v229 = vunpack.c.l.b16 %v175
  %v230 = vunpack.c.l.b16 %v176
  %v231 = vunpack.c.l.b16 %v177
  %v232 = vunpack.c.l.b16 %v178
  %v233 = vunpack.c.l.b16 %v179
  %v234 = vunpack.c.l.b16 %v180
  %v235 = vunpack.c.l.b16 %v181
  %v236 = vunpack.c.l.b16 %v182
  %v237 = vunpack.c.l.b16 %v183
  %v238 = vunpack.c.l.b16 %v184
  %v239 = vunpack.c.l.b16 %v185
  %v240 = vunpack.c.l.b16 %v186
  %v241 = vunpack.c.l.b16 %v187
  %v242 = vunpack.c.l.b16 %v188
  %v243 = vunpack.c.l.b16 %v189
  %v244 = vunpack.c.l.b16 %v190
  %v245 = vpack.c.b16 %v228, %v227
  %v246 = vpack.c.b16 %v230, %v229
  %v247 = vpack.c.b16 %v232, %v231
  %v248 = vpack.c.b16 %v234, %v233
  %v249 = vpack.c.b16 %v236, %v235
  %v250 = vpack.c.b16 %v238, %v237
  %v251 = vpack.c.b16 %v240, %v239
  %v252 = vpack.c.b16 %v242, %v241
  %v253 = vpack.c.b16 %v244, %v243
  %v264 = vsel %vm124, %v204, 0
  %v267 = vsel %vm124, %v206, 0
  %269 = vmatpush.bf16.msra.mxu0 %v252
  %270 = vmatpush.bf16.msra.mxu0 %v251
  %271 = vmatpush.bf16.msra.mxu0 %v250
  %272 = vmatpush.bf16.msra.mxu0 %v249
  %273 = vmatpush.bf16.msra.mxu0 %v248
  %274 = vmatpush.bf16.msra.mxu0 %v247
  %275 = vmatpush.bf16.msra.mxu0 %v246
  %276 = vmatpush.bf16.msra.mxu0 %v245
  %277 = vmatmul.bf16.gmra.mxu0 %v203
  %v278 = vpop.f32.mrf.mxu0
  %v279 = vadd.f32 0.0, %v278
  %v280 = vpop.f32.mrf.mxu0
  %v281 = vadd.f32 0.0, %v280
  %282 = vmatmul.bf16.gmra.mxu0 %v205
  %v283 = vpop.f32.mrf.mxu0
  %v284 = vadd.f32 0.0, %v283
  %v285 = vpop.f32.mrf.mxu0
  %v286 = vadd.f32 0.0, %v285
  %287 = vdwg.mxu0
  %288 = vmatpush.bf16.msra.mxu0 0
  %289 = vmatpush.bf16.msra.mxu0 0
  %290 = vmatpush.bf16.msra.mxu0 0
  %291 = vmatpush.bf16.msra.mxu0 0
  %292 = vmatpush.bf16.msra.mxu0 0
  %293 = vmatpush.bf16.msra.mxu0 0
  %294 = vmatpush.bf16.msra.mxu0 0
  %295 = vmatpush.bf16.msra.mxu0 %v253
  %296 = vmatmul.bf16.gmra.mxu0 %v264
  %v297 = vpop.f32.mrf.mxu0
  %v298 = vadd.f32 %v279, %v297
  %v299 = vpop.f32.mrf.mxu0
  %v300 = vadd.f32 %v281, %v299
  %301 = vmatmul.bf16.gmra.mxu0 %v267
  %v302 = vpop.f32.mrf.mxu0
  %v303 = vadd.f32 %v284, %v302
  %v304 = vpop.f32.mrf.mxu0
  %v305 = vadd.f32 %v286, %v304
  %306 = vdwg.mxu0
  %v307 = vld [vmem:[%s2] sm:$0xff]
  %v308 = vld [vmem:[%s2 + $0x8] sm:$0xff]
  %v309 = vld [vmem:[%s2 + $0x10] sm:$0xff]
  %v310 = vld [vmem:[%s2 + $0x18] sm:$0xff]
  %v311 = vld [vmem:[%s5] sm:$0xf]
  %v312 = vld [vmem:[%s5 + $0x4] sm:$0xf]
  %v313 = vld [vmem:[%s5 + $0x8] sm:$0xf]
  %v314 = vld [vmem:[%s5 + $0xc] sm:$0xf]
  %v315 = vld [vmem:[%s5 + $0x10] sm:$0xf]
  %v316 = vld [vmem:[%s5 + $0x14] sm:$0xf]
  %v317 = vld [vmem:[%s5 + $0x18] sm:$0xf]
  %v318 = vld [vmem:[%s5 + $0x1c] sm:$0xf]
  %v319 = vld [vmem:[%s5 + $0x20] sm:$0xf]
  %v320 = vld [vmem:[%s5 + $0x24] sm:$0xf]
  %v321 = vld [vmem:[%s5 + $0x28] sm:$0xf]
  %v322 = vld [vmem:[%s5 + $0x2c] sm:$0xf]
  %v323 = vld [vmem:[%s5 + $0x30] sm:$0xf]
  %v324 = vld [vmem:[%s5 + $0x34] sm:$0xf]
  %v325 = vld [vmem:[%s5 + $0x38] sm:$0xf]
  %v326 = vld [vmem:[%s5 + $0x3c] sm:$0xf]
  %v327 = vld [vmem:[%s5 + $0x40] sm:$0xf]
  %v328 = vld [vmem:[%s5 + $0x44] sm:$0xf]
  %v333 = vunpack.c.l.b16 %v307
  %v334 = vunpack.c.h.b16 %v307
  %v335 = vunpack.c.l.b16 %v308
  %v336 = vunpack.c.h.b16 %v308
  %v337 = vunpack.c.l.b16 %v309
  %v338 = vunpack.c.h.b16 %v309
  %v339 = vunpack.c.l.b16 %v310
  %v340 = vunpack.c.h.b16 %v310
  %v341 = vpack.c.b16 %v335, %v333
  %v342 = vpack.c.b16 %v336, %v334
  %v343 = vpack.c.b16 %v339, %v337
  %v344 = vpack.c.b16 %v340, %v338
  %v365 = vunpack.c.l.b16 %v311
  %v366 = vunpack.c.l.b16 %v312
  %v367 = vunpack.c.l.b16 %v313
  %v368 = vunpack.c.l.b16 %v314
  %v369 = vunpack.c.l.b16 %v315
  %v370 = vunpack.c.l.b16 %v316
  %v371 = vunpack.c.l.b16 %v317
  %v372 = vunpack.c.l.b16 %v318
  %v373 = vunpack.c.l.b16 %v319
  %v374 = vunpack.c.l.b16 %v320
  %v375 = vunpack.c.l.b16 %v321
  %v376 = vunpack.c.l.b16 %v322
  %v377 = vunpack.c.l.b16 %v323
  %v378 = vunpack.c.l.b16 %v324
  %v379 = vunpack.c.l.b16 %v325
  %v380 = vunpack.c.l.b16 %v326
  %v381 = vunpack.c.l.b16 %v327
  %v382 = vunpack.c.l.b16 %v328
  %v383 = vpack.c.b16 %v366, %v365
  %v384 = vpack.c.b16 %v368, %v367
  %v385 = vpack.c.b16 %v370, %v369
  %v386 = vpack.c.b16 %v372, %v371
  %v387 = vpack.c.b16 %v374, %v373
  %v388 = vpack.c.b16 %v376, %v375
  %v389 = vpack.c.b16 %v378, %v377
  %v390 = vpack.c.b16 %v380, %v379
  %v391 = vpack.c.b16 %v382, %v381
  %v402 = vsel %vm124, %v342, 0
  %v405 = vsel %vm124, %v344, 0
  %407 = vmatpush.bf16.msra.mxu0 %v390
  %408 = vmatpush.bf16.msra.mxu0 %v389
  %409 = vmatpush.bf16.msra.mxu0 %v388
  %410 = vmatpush.bf16.msra.mxu0 %v387
  %411 = vmatpush.bf16.msra.mxu0 %v386
  %412 = vmatpush.bf16.msra.mxu0 %v385
  %413 = vmatpush.bf16.msra.mxu0 %v384
  %414 = vmatpush.bf16.msra.mxu0 %v383
  %415 = vmatmul.bf16.gmra.mxu0 %v341
  %v416 = vpop.f32.mrf.mxu0
  %v417 = vadd.f32 0.0, %v416
  %v418 = vpop.f32.mrf.mxu0
  %v419 = vadd.f32 0.0, %v418
  %420 = vmatmul.bf16.gmra.mxu0 %v343
  %v421 = vpop.f32.mrf.mxu0
  %v422 = vadd.f32 0.0, %v421
  %v423 = vpop.f32.mrf.mxu0
  %v424 = vadd.f32 0.0, %v423
  %425 = vdwg.mxu0
  %426 = vmatpush.bf16.msra.mxu0 0
  %427 = vmatpush.bf16.msra.mxu0 0
  %428 = vmatpush.bf16.msra.mxu0 0
  %429 = vmatpush.bf16.msra.mxu0 0
  %430 = vmatpush.bf16.msra.mxu0 0
  %431 = vmatpush.bf16.msra.mxu0 0
  %432 = vmatpush.bf16.msra.mxu0 0
  %433 = vmatpush.bf16.msra.mxu0 %v391
  %434 = vmatmul.bf16.gmra.mxu0 %v402
  %v435 = vpop.f32.mrf.mxu0
  %v436 = vadd.f32 %v417, %v435
  %v437 = vpop.f32.mrf.mxu0
  %v438 = vadd.f32 %v419, %v437
  %439 = vmatmul.bf16.gmra.mxu0 %v405
  %v440 = vpop.f32.mrf.mxu0
  %v441 = vadd.f32 %v422, %v440
  %v442 = vpop.f32.mrf.mxu0
  %v443 = vadd.f32 %v424, %v442
  %444 = vdwg.mxu0
  %v445 = vadd.f32 %v160, %v298
  %v446 = vadd.f32 %v162, %v300
  %v447 = vadd.f32 %v165, %v303
  %v448 = vadd.f32 %v167, %v305
  %v449 = vxor.u32 %v445, 2147483648
  %v450 = vxor.u32 %v446, 2147483648
  %v451 = vxor.u32 %v447, 2147483648
  %v452 = vxor.u32 %v448, 2147483648
  %v453 = vmul.f32 %v449, 1.442695
  %v454 = vpow.pop %v453
  %v455 = vmul.f32 %v450, 1.442695
  %v456 = vpow.pop %v455
  %v457 = vmul.f32 %v451, 1.442695
  %v458 = vpow.pop %v457
  %v459 = vmul.f32 %v452, 1.442695
  %v460 = vpow.pop %v459
  %v461 = vadd.f32 %v454, 1.0
  %v462 = vadd.f32 %v456, 1.0
  %v463 = vadd.f32 %v458, 1.0
  %v464 = vadd.f32 %v460, 1.0
  %v465 = vrcp.pop %v461
  %v466 = vmul.f32 %v461, %v465
  %v467 = vsub.f32 1.0, %v466
  %v468 = vmul.f32 %v465, %v467
  %v469 = vadd.f32 %v465, %v468
  %vm470 = vweird.f32 %v461
  %vm471 = vweird.f32 %v465
  %vm472 = vmor %vm470, %vm471
  %v473 = vsel %vm472, %v465, %v469
  %v474 = vand.u32 2147483647, %v461
  %vm475 = vcmp.eq.f32.partialorder %v474, 8.507059e+37
  %v476 = vand.u32 %v461, 2147483648
  %v477 = vor.u32 1.1754944e-38, %v476
  %v478 = vsel %vm475, %v477, %v473
  %v479 = vmul.f32 1.0, %v478
  %v480 = vrcp.pop %v462
  %v481 = vmul.f32 %v462, %v480
  %v482 = vsub.f32 1.0, %v481
  %v483 = vmul.f32 %v480, %v482
  %v484 = vadd.f32 %v480, %v483
  %vm485 = vweird.f32 %v462
  %vm486 = vweird.f32 %v480
  %vm487 = vmor %vm485, %vm486
  %v488 = vsel %vm487, %v480, %v484
  %v489 = vand.u32 2147483647, %v462
  %vm490 = vcmp.eq.f32.partialorder %v489, 8.507059e+37
  %v491 = vand.u32 %v462, 2147483648
  %v492 = vor.u32 1.1754944e-38, %v491
  %v493 = vsel %vm490, %v492, %v488
  %v494 = vmul.f32 1.0, %v493
  %v495 = vrcp.pop %v463
  %v496 = vmul.f32 %v463, %v495
  %v497 = vsub.f32 1.0, %v496
  %v498 = vmul.f32 %v495, %v497
  %v499 = vadd.f32 %v495, %v498
  %vm500 = vweird.f32 %v463
  %vm501 = vweird.f32 %v495
  %vm502 = vmor %vm500, %vm501
  %v503 = vsel %vm502, %v495, %v499
  %v504 = vand.u32 2147483647, %v463
  %vm505 = vcmp.eq.f32.partialorder %v504, 8.507059e+37
  %v506 = vand.u32 %v463, 2147483648
  %v507 = vor.u32 1.1754944e-38, %v506
  %v508 = vsel %vm505, %v507, %v503
  %v509 = vmul.f32 1.0, %v508
  %v510 = vrcp.pop %v464
  %v511 = vmul.f32 %v464, %v510
  %v512 = vsub.f32 1.0, %v511
  %v513 = vmul.f32 %v510, %v512
  %v514 = vadd.f32 %v510, %v513
  %vm515 = vweird.f32 %v464
  %vm516 = vweird.f32 %v510
  %vm517 = vmor %vm515, %vm516
  %v518 = vsel %vm517, %v510, %v514
  %v519 = vand.u32 2147483647, %v464
  %vm520 = vcmp.eq.f32.partialorder %v519, 8.507059e+37
  %v521 = vand.u32 %v464, 2147483648
  %v522 = vor.u32 1.1754944e-38, %v521
  %v523 = vsel %vm520, %v522, %v518
  %v524 = vmul.f32 1.0, %v523
  %v525 = vadd.f32 %v445, 1.0
  %v526 = vadd.f32 %v446, 1.0
  %v527 = vadd.f32 %v447, 1.0
  %v528 = vadd.f32 %v448, 1.0
  %v529 = vxor.u32 %v525, 2147483648
  %v530 = vxor.u32 %v526, 2147483648
  %v531 = vxor.u32 %v527, 2147483648
  %v532 = vxor.u32 %v528, 2147483648
  %v533 = vmul.f32 %v529, 1.442695
  %v534 = vpow.pop %v533
  %v535 = vmul.f32 %v530, 1.442695
  %v536 = vpow.pop %v535
  %v537 = vmul.f32 %v531, 1.442695
  %v538 = vpow.pop %v537
  %v539 = vmul.f32 %v532, 1.442695
  %v540 = vpow.pop %v539
  %v541 = vadd.f32 %v534, 1.0
  %v542 = vadd.f32 %v536, 1.0
  %v543 = vadd.f32 %v538, 1.0
  %v544 = vadd.f32 %v540, 1.0
  %v545 = vrcp.pop %v541
  %v546 = vmul.f32 %v541, %v545
  %v547 = vsub.f32 1.0, %v546
  %v548 = vmul.f32 %v545, %v547
  %v549 = vadd.f32 %v545, %v548
  %vm550 = vweird.f32 %v541
  %vm551 = vweird.f32 %v545
  %vm552 = vmor %vm550, %vm551
  %v553 = vsel %vm552, %v545, %v549
  %v554 = vand.u32 2147483647, %v541
  %vm555 = vcmp.eq.f32.partialorder %v554, 8.507059e+37
  %v556 = vand.u32 %v541, 2147483648
  %v557 = vor.u32 1.1754944e-38, %v556
  %v558 = vsel %vm555, %v557, %v553
  %v559 = vmul.f32 1.0, %v558
  %v560 = vrcp.pop %v542
  %v561 = vmul.f32 %v542, %v560
  %v562 = vsub.f32 1.0, %v561
  %v563 = vmul.f32 %v560, %v562
  %v564 = vadd.f32 %v560, %v563
  %vm565 = vweird.f32 %v542
  %vm566 = vweird.f32 %v560
  %vm567 = vmor %vm565, %vm566
  %v568 = vsel %vm567, %v560, %v564
  %v569 = vand.u32 2147483647, %v542
  %vm570 = vcmp.eq.f32.partialorder %v569, 8.507059e+37
  %v571 = vand.u32 %v542, 2147483648
  %v572 = vor.u32 1.1754944e-38, %v571
  %v573 = vsel %vm570, %v572, %v568
  %v574 = vmul.f32 1.0, %v573
  %v575 = vrcp.pop %v543
  %v576 = vmul.f32 %v543, %v575
  %v577 = vsub.f32 1.0, %v576
  %v578 = vmul.f32 %v575, %v577
  %v579 = vadd.f32 %v575, %v578
  %vm580 = vweird.f32 %v543
  %vm581 = vweird.f32 %v575
  %vm582 = vmor %vm580, %vm581
  %v583 = vsel %vm582, %v575, %v579
  %v584 = vand.u32 2147483647, %v543
  %vm585 = vcmp.eq.f32.partialorder %v584, 8.507059e+37
  %v586 = vand.u32 %v543, 2147483648
  %v587 = vor.u32 1.1754944e-38, %v586
  %v588 = vsel %vm585, %v587, %v583
  %v589 = vmul.f32 1.0, %v588
  %v590 = vrcp.pop %v544
  %v591 = vmul.f32 %v544, %v590
  %v592 = vsub.f32 1.0, %v591
  %v593 = vmul.f32 %v590, %v592
  %v594 = vadd.f32 %v590, %v593
  %vm595 = vweird.f32 %v544
  %vm596 = vweird.f32 %v590
  %vm597 = vmor %vm595, %vm596
  %v598 = vsel %vm597, %v590, %v594
  %v599 = vand.u32 2147483647, %v544
  %vm600 = vcmp.eq.f32.partialorder %v599, 8.507059e+37
  %v601 = vand.u32 %v544, 2147483648
  %v602 = vor.u32 1.1754944e-38, %v601
  %v603 = vsel %vm600, %v602, %v598
  %v604 = vmul.f32 1.0, %v603
  %v605 = vtanh.pop %v445
  %v606 = vtanh.pop %v446
  %v607 = vtanh.pop %v447
  %v608 = vtanh.pop %v448
  %v609 = vld [vmem:[%s6] sm:$0xff]
  %v610 = vld [vmem:[%s6 + $0x8] sm:$0xff]
  %v611 = vld [vmem:[%s6 + $0x10] sm:$0xff]
  %v612 = vld [vmem:[%s6 + $0x18] sm:$0xff]
  %617 = vrot.lane.b32.xlu0 %v609, 16
  %v618 = vpop.permute.xlu0 %617
  %619 = vrot.lane.b32.xlu0 %v610, 16
  %v620 = vpop.permute.xlu0 %619
  %621 = vrot.lane.b32.xlu0 %v611, 16
  %v622 = vpop.permute.xlu0 %621
  %623 = vrot.lane.b32.xlu0 %v612, 16
  %v624 = vpop.permute.xlu0 %623
  %v629 = vmul.f32 %v559, %v618
  %v630 = vmul.f32 %v574, %v620
  %v631 = vmul.f32 %v589, %v622
  %v632 = vmul.f32 %v604, %v624
  %637 = vrot.lane.b32.xlu0 %v605, 96
  %v638 = vpop.permute.xlu0 %637
  %639 = vrot.lane.b32.xlu0 %v606, 96
  %v640 = vpop.permute.xlu0 %639
  %641 = vrot.lane.b32.xlu0 %v607, 96
  %v642 = vpop.permute.xlu0 %641
  %643 = vrot.lane.b32.xlu0 %v608, 96
  %v644 = vpop.permute.xlu0 %643
  %v649 = vmul.f32 %v479, %v638
  %v650 = vmul.f32 %v494, %v640
  %v651 = vmul.f32 %v509, %v642
  %v652 = vmul.f32 %v524, %v644
  %657 = vrot.lane.b32.xlu0 %v649, 16
  %v658 = vpop.permute.xlu0 %657
  %659 = vrot.lane.b32.xlu0 %v650, 16
  %v660 = vpop.permute.xlu0 %659
  %661 = vrot.lane.b32.xlu0 %v651, 16
  %v662 = vpop.permute.xlu0 %661
  %663 = vrot.lane.b32.xlu0 %v652, 16
  %v664 = vpop.permute.xlu0 %663
  %v669 = vadd.f32 %v629, %v658
  %v670 = vadd.f32 %v630, %v660
  %v671 = vadd.f32 %v631, %v662
  %v672 = vadd.f32 %v632, %v664
  %677 = vrot.lane.b32.xlu0 %v436, 48
  %v678 = vpop.permute.xlu0 %677
  %679 = vrot.lane.b32.xlu0 %v438, 48
  %v680 = vpop.permute.xlu0 %679
  %681 = vrot.lane.b32.xlu0 %v441, 48
  %v682 = vpop.permute.xlu0 %681
  %683 = vrot.lane.b32.xlu0 %v443, 48
  %v684 = vpop.permute.xlu0 %683
  %v689 = vadd.f32 %v160, %v678
  %v690 = vadd.f32 %v162, %v680
  %v691 = vadd.f32 %v165, %v682
  %v692 = vadd.f32 %v167, %v684
  %v693 = vxor.u32 %v689, 2147483648
  %v694 = vxor.u32 %v690, 2147483648
  %v695 = vxor.u32 %v691, 2147483648
  %v696 = vxor.u32 %v692, 2147483648
  %v697 = vmul.f32 %v693, 1.442695
  %v698 = vpow.pop %v697
  %v699 = vmul.f32 %v694, 1.442695
  %v700 = vpow.pop %v699
  %v701 = vmul.f32 %v695, 1.442695
  %v702 = vpow.pop %v701
  %v703 = vmul.f32 %v696, 1.442695
  %v704 = vpow.pop %v703
  %v705 = vadd.f32 %v698, 1.0
  %v706 = vadd.f32 %v700, 1.0
  %v707 = vadd.f32 %v702, 1.0
  %v708 = vadd.f32 %v704, 1.0
  %v709 = vrcp.pop %v705
  %v710 = vmul.f32 %v705, %v709
  %v711 = vsub.f32 1.0, %v710
  %v712 = vmul.f32 %v709, %v711
  %v713 = vadd.f32 %v709, %v712
  %vm714 = vweird.f32 %v705
  %vm715 = vweird.f32 %v709
  %vm716 = vmor %vm714, %vm715
  %v717 = vsel %vm716, %v709, %v713
  %v718 = vand.u32 2147483647, %v705
  %vm719 = vcmp.eq.f32.partialorder %v718, 8.507059e+37
  %v720 = vand.u32 %v705, 2147483648
  %v721 = vor.u32 1.1754944e-38, %v720
  %v722 = vsel %vm719, %v721, %v717
  %v723 = vmul.f32 1.0, %v722
  %v724 = vrcp.pop %v706
  %v725 = vmul.f32 %v706, %v724
  %v726 = vsub.f32 1.0, %v725
  %v727 = vmul.f32 %v724, %v726
  %v728 = vadd.f32 %v724, %v727
  %vm729 = vweird.f32 %v706
  %vm730 = vweird.f32 %v724
  %vm731 = vmor %vm729, %vm730
  %v732 = vsel %vm731, %v724, %v728
  %v733 = vand.u32 2147483647, %v706
  %vm734 = vcmp.eq.f32.partialorder %v733, 8.507059e+37
  %v735 = vand.u32 %v706, 2147483648
  %v736 = vor.u32 1.1754944e-38, %v735
  %v737 = vsel %vm734, %v736, %v732
  %v738 = vmul.f32 1.0, %v737
  %v739 = vrcp.pop %v707
  %v740 = vmul.f32 %v707, %v739
  %v741 = vsub.f32 1.0, %v740
  %v742 = vmul.f32 %v739, %v741
  %v743 = vadd.f32 %v739, %v742
  %vm744 = vweird.f32 %v707
  %vm745 = vweird.f32 %v739
  %vm746 = vmor %vm744, %vm745
  %v747 = vsel %vm746, %v739, %v743
  %v748 = vand.u32 2147483647, %v707
  %vm749 = vcmp.eq.f32.partialorder %v748, 8.507059e+37
  %v750 = vand.u32 %v707, 2147483648
  %v751 = vor.u32 1.1754944e-38, %v750
  %v752 = vsel %vm749, %v751, %v747
  %v753 = vmul.f32 1.0, %v752
  %v754 = vrcp.pop %v708
  %v755 = vmul.f32 %v708, %v754
  %v756 = vsub.f32 1.0, %v755
  %v757 = vmul.f32 %v754, %v756
  %v758 = vadd.f32 %v754, %v757
  %vm759 = vweird.f32 %v708
  %vm760 = vweird.f32 %v754
  %vm761 = vmor %vm759, %vm760
  %v762 = vsel %vm761, %v754, %v758
  %v763 = vand.u32 2147483647, %v708
  %vm764 = vcmp.eq.f32.partialorder %v763, 8.507059e+37
  %v765 = vand.u32 %v708, 2147483648
  %v766 = vor.u32 1.1754944e-38, %v765
  %v767 = vsel %vm764, %v766, %v762
  %v768 = vmul.f32 1.0, %v767
  %v769 = vadd.f32 %v689, 1.0
  %v770 = vadd.f32 %v690, 1.0
  %v771 = vadd.f32 %v691, 1.0
  %v772 = vadd.f32 %v692, 1.0
  %v773 = vxor.u32 %v769, 2147483648
  %v774 = vxor.u32 %v770, 2147483648
  %v775 = vxor.u32 %v771, 2147483648
  %v776 = vxor.u32 %v772, 2147483648
  %v777 = vmul.f32 %v773, 1.442695
  %v778 = vpow.pop %v777
  %v779 = vmul.f32 %v774, 1.442695
  %v780 = vpow.pop %v779
  %v781 = vmul.f32 %v775, 1.442695
  %v782 = vpow.pop %v781
  %v783 = vmul.f32 %v776, 1.442695
  %v784 = vpow.pop %v783
  %v785 = vadd.f32 %v778, 1.0
  %v786 = vadd.f32 %v780, 1.0
  %v787 = vadd.f32 %v782, 1.0
  %v788 = vadd.f32 %v784, 1.0
  %v789 = vrcp.pop %v785
  %v790 = vmul.f32 %v785, %v789
  %v791 = vsub.f32 1.0, %v790
  %v792 = vmul.f32 %v789, %v791
  %v793 = vadd.f32 %v789, %v792
  %vm794 = vweird.f32 %v785
  %vm795 = vweird.f32 %v789
  %vm796 = vmor %vm794, %vm795
  %v797 = vsel %vm796, %v789, %v793
  %v798 = vand.u32 2147483647, %v785
  %vm799 = vcmp.eq.f32.partialorder %v798, 8.507059e+37
  %v800 = vand.u32 %v785, 2147483648
  %v801 = vor.u32 1.1754944e-38, %v800
  %v802 = vsel %vm799, %v801, %v797
  %v803 = vmul.f32 1.0, %v802
  %v804 = vrcp.pop %v786
  %v805 = vmul.f32 %v786, %v804
  %v806 = vsub.f32 1.0, %v805
  %v807 = vmul.f32 %v804, %v806
  %v808 = vadd.f32 %v804, %v807
  %vm809 = vweird.f32 %v786
  %vm810 = vweird.f32 %v804
  %vm811 = vmor %vm809, %vm810
  %v812 = vsel %vm811, %v804, %v808
  %v813 = vand.u32 2147483647, %v786
  %vm814 = vcmp.eq.f32.partialorder %v813, 8.507059e+37
  %v815 = vand.u32 %v786, 2147483648
  %v816 = vor.u32 1.1754944e-38, %v815
  %v817 = vsel %vm814, %v816, %v812
  %v818 = vmul.f32 1.0, %v817
  %v819 = vrcp.pop %v787
  %v820 = vmul.f32 %v787, %v819
  %v821 = vsub.f32 1.0, %v820
  %v822 = vmul.f32 %v819, %v821
  %v823 = vadd.f32 %v819, %v822
  %vm824 = vweird.f32 %v787
  %vm825 = vweird.f32 %v819
  %vm826 = vmor %vm824, %vm825
  %v827 = vsel %vm826, %v819, %v823
  %v828 = vand.u32 2147483647, %v787
  %vm829 = vcmp.eq.f32.partialorder %v828, 8.507059e+37
  %v830 = vand.u32 %v787, 2147483648
  %v831 = vor.u32 1.1754944e-38, %v830
  %v832 = vsel %vm829, %v831, %v827
  %v833 = vmul.f32 1.0, %v832
  %v834 = vrcp.pop %v788
  %v835 = vmul.f32 %v788, %v834
  %v836 = vsub.f32 1.0, %v835
  %v837 = vmul.f32 %v834, %v836
  %v838 = vadd.f32 %v834, %v837
  %vm839 = vweird.f32 %v788
  %vm840 = vweird.f32 %v834
  %vm841 = vmor %vm839, %vm840
  %v842 = vsel %vm841, %v834, %v838
  %v843 = vand.u32 2147483647, %v788
  %vm844 = vcmp.eq.f32.partialorder %v843, 8.507059e+37
  %v845 = vand.u32 %v788, 2147483648
  %v846 = vor.u32 1.1754944e-38, %v845
  %v847 = vsel %vm844, %v846, %v842
  %v848 = vmul.f32 1.0, %v847
  %v849 = vtanh.pop %v689
  %v850 = vtanh.pop %v690
  %v851 = vtanh.pop %v691
  %v852 = vtanh.pop %v692
  %v853 = vld [vmem:[%s7] sm:$0xff]
  %v854 = vld [vmem:[%s7 + $0x8] sm:$0xff]
  %v855 = vld [vmem:[%s7 + $0x10] sm:$0xff]
  %v856 = vld [vmem:[%s7 + $0x18] sm:$0xff]
  %861 = vrot.lane.b32.xlu0 %v853, 64
  %v862 = vpop.permute.xlu0 %861
  %863 = vrot.lane.b32.xlu0 %v854, 64
  %v864 = vpop.permute.xlu0 %863
  %865 = vrot.lane.b32.xlu0 %v855, 64
  %v866 = vpop.permute.xlu0 %865
  %867 = vrot.lane.b32.xlu0 %v856, 64
  %v868 = vpop.permute.xlu0 %867
  %v873 = vmul.f32 %v803, %v862
  %v874 = vmul.f32 %v818, %v864
  %v875 = vmul.f32 %v833, %v866
  %v876 = vmul.f32 %v848, %v868
  %881 = vrot.lane.b32.xlu0 %v849, 96
  %v882 = vpop.permute.xlu0 %881
  %883 = vrot.lane.b32.xlu0 %v850, 96
  %v884 = vpop.permute.xlu0 %883
  %885 = vrot.lane.b32.xlu0 %v851, 96
  %v886 = vpop.permute.xlu0 %885
  %887 = vrot.lane.b32.xlu0 %v852, 96
  %v888 = vpop.permute.xlu0 %887
  %v893 = vmul.f32 %v723, %v882
  %v894 = vmul.f32 %v738, %v884
  %v895 = vmul.f32 %v753, %v886
  %v896 = vmul.f32 %v768, %v888
  %901 = vrot.lane.b32.xlu0 %v893, 16
  %v902 = vpop.permute.xlu0 %901
  %903 = vrot.lane.b32.xlu0 %v894, 16
  %v904 = vpop.permute.xlu0 %903
  %905 = vrot.lane.b32.xlu0 %v895, 16
  %v906 = vpop.permute.xlu0 %905
  %907 = vrot.lane.b32.xlu0 %v896, 16
  %v908 = vpop.permute.xlu0 %907
  %v913 = vadd.f32 %v873, %v902
  %v914 = vadd.f32 %v874, %v904
  %v915 = vadd.f32 %v875, %v906
  %v916 = vadd.f32 %v876, %v908
  %921 = vrot.lane.b32.xlu0 %v298, 48
  %v922 = vpop.permute.xlu0 %921
  %923 = vrot.lane.b32.xlu0 %v300, 48
  %v924 = vpop.permute.xlu0 %923
  %925 = vrot.lane.b32.xlu0 %v303, 48
  %v926 = vpop.permute.xlu0 %925
  %927 = vrot.lane.b32.xlu0 %v305, 48
  %v928 = vpop.permute.xlu0 %927
  %v933 = vadd.f32 %v160, %v922
  %v934 = vadd.f32 %v162, %v924
  %v935 = vadd.f32 %v165, %v926
  %v936 = vadd.f32 %v167, %v928
  %941 = vrot.lane.b32.xlu0 %v669, 112
  %v942 = vpop.permute.xlu0 %941
  %943 = vrot.lane.b32.xlu0 %v670, 112
  %v944 = vpop.permute.xlu0 %943
  %945 = vrot.lane.b32.xlu0 %v671, 112
  %v946 = vpop.permute.xlu0 %945
  %947 = vrot.lane.b32.xlu0 %v672, 112
  %v948 = vpop.permute.xlu0 %947
  %957 = vrot.lane.b32.xlu0 %v913, 80
  %v958 = vpop.permute.xlu0 %957
  %959 = vrot.lane.b32.xlu0 %v914, 80
  %v960 = vpop.permute.xlu0 %959
  %961 = vrot.lane.b32.xlu0 %v915, 80
  %v962 = vpop.permute.xlu0 %961
  %963 = vrot.lane.b32.xlu0 %v916, 80
  %v964 = vpop.permute.xlu0 %963
  %973 = vrot.lane.b32.xlu0 %v933, 64
  %v974 = vpop.permute.xlu0 %973
  %975 = vrot.lane.b32.xlu0 %v934, 64
  %v976 = vpop.permute.xlu0 %975
  %977 = vrot.lane.b32.xlu0 %v935, 64
  %v978 = vpop.permute.xlu0 %977
  %979 = vrot.lane.b32.xlu0 %v936, 64
  %v980 = vpop.permute.xlu0 %979
  %v985 = vsel %vm124, %v942, %v958
  %v986 = vsel %vm124, %v944, %v960
  %v987 = vsel %vm124, %v946, %v962
  %v988 = vsel %vm124, %v948, %v964
  %vm989 = vcmask 261120
  %v990 = vsel %vm989, %v985, %v974
  %v991 = vsel %vm989, %v986, %v976
  %v992 = vsel %vm989, %v987, %v978
  %v993 = vsel %vm989, %v988, %v980
  %vm994 = vcmask 392192
  %995 = vst.msk [vmem:[%s8] sm:$0xff] %vm994, %v990
  %996 = vst.msk [vmem:[%s8 + $0x8] sm:$0xff] %vm994, %v991
  %997 = vst.msk [vmem:[%s8 + $0x10] sm:$0xff] %vm994, %v992
  %998 = vst.msk [vmem:[%s8 + $0x18] sm:$0xff] %vm994, %v993
  // Predicated region
  $region34: #{_lambda_.21} parent=0 // pred_check
    _
  $region35: #{_lambda_.21} parent=0 // pred_check_branch
    %1000 = sbr.rel (0) target = $region37
  $region36: #{_lambda_.21} parent=0 // pred_region
    _
  $region37: #{_lambda_.21} parent=0 // pred_fallthru
    _
  // Predicated region
  $region38: #{_lambda_.21} parent=0 // pred_check
    _
  $region39: #{_lambda_.21} parent=0 // pred_check_branch
    %1002 = sbr.rel (0) target = $region41
  $region40: #{_lambda_.21} parent=0 // pred_region
    _
  $region41: #{_lambda_.21} parent=0 // pred_fallthru
    _

// kernel: _lambda_.24
$region0: #{_lambda_.24}
  #allocation0 [shape = 'u32[]', space=smem, size = 0x4, offset = 0x4, fixed_abs, tag = 'smem constant byte address 0x4 - core index']
  #allocation1 [shape = 'u32[72,128]{1,0:T(1,128)}', space=vmem, size = 0x9000, scoped, tag = 'internal scratch']
  %s0 = inlined_call_operand.vmem [shape: bf16[32,288], index: 0, kind: input, shape index: {}]
  %s1 = inlined_call_operand.vmem [shape: bf16[288,32], index: 1, kind: input, shape index: {}]
  %s2 = inlined_call_operand.vmem [shape: bf16[16,16], index: 2, kind: input, shape index: {}]
  %s3 = inlined_call_operand.vmem [shape: f32[32,16], index: 3, kind: input, shape index: {}]
  %s4 = inlined_call_operand.vmem [shape: f32[32,16], index: 4, kind: output, shape index: {0}]
  %s5 = inlined_call_operand.vmem [shape: f32[32,16], index: 5, kind: output, shape index: {1}]
  %6 = xla_tuple %s4, %s5
  %s7 = sld [smem:[#allocation0]]
  $region34: #{_lambda_.24} parent=0
    _
  %s9 = ssub.s32 1, %s7
  %s10 = scalar_select 0, %s9, %s7
  // Predicated region
  $region2: #{_lambda_.24} parent=0 // pred_check
    _
  $region3: #{_lambda_.24} parent=0 // pred_check_branch
    %12 = sbr.rel (0) target = $region5
  $region4: #{_lambda_.24} parent=0 // pred_region
    _
  $region5: #{_lambda_.24} parent=0 // pred_fallthru
    _
  // Predicated region
  $region6: #{_lambda_.24} parent=0 // pred_check
    _
  $region7: #{_lambda_.24} parent=0 // pred_check_branch
    %14 = sbr.rel (0) target = $region9
  $region8: #{_lambda_.24} parent=0 // pred_region
    _
  $region9: #{_lambda_.24} parent=0 // pred_fallthru
    _
  // Predicated region
  $region10: #{_lambda_.24} parent=0 // pred_check
    _
  $region11: #{_lambda_.24} parent=0 // pred_check_branch
    %16 = sbr.rel (0) target = $region13
  $region12: #{_lambda_.24} parent=0 // pred_region
    _
  $region13: #{_lambda_.24} parent=0 // pred_fallthru
    _
  // Predicated region
  $region14: #{_lambda_.24} parent=0 // pred_check
    _
  $region15: #{_lambda_.24} parent=0 // pred_check_branch
    %18 = sbr.rel (0) target = $region17
  $region16: #{_lambda_.24} parent=0 // pred_region
    _
  $region17: #{_lambda_.24} parent=0 // pred_fallthru
    _
  %v20 = vld [vmem:[%s0] sm:$0xff]
  %v21 = vld [vmem:[%s0 + $0x8] sm:$0xf]
  %v22 = vld [vmem:[%s0 + $0xc] sm:$0xff]
  %v23 = vld [vmem:[%s0 + $0x14] sm:$0xf]
  %v24 = vld [vmem:[%s0 + $0x18] sm:$0xff]
  %v25 = vld [vmem:[%s0 + $0x20] sm:$0xf]
  %v26 = vld [vmem:[%s0 + $0x24] sm:$0xff]
  %v27 = vld [vmem:[%s0 + $0x2c] sm:$0xf]
  %v28 = vld [vmem:[%s1] sm:$0xf]
  %v29 = vld [vmem:[%s1 + $0x4] sm:$0xf]
  %v30 = vld [vmem:[%s1 + $0x8] sm:$0xf]
  %v31 = vld [vmem:[%s1 + $0xc] sm:$0xf]
  %v32 = vld [vmem:[%s1 + $0x10] sm:$0xf]
  %v33 = vld [vmem:[%s1 + $0x14] sm:$0xf]
  %v34 = vld [vmem:[%s1 + $0x18] sm:$0xf]
  %v35 = vld [vmem:[%s1 + $0x1c] sm:$0xf]
  %v36 = vld [vmem:[%s1 + $0x20] sm:$0xf]
  %v37 = vld [vmem:[%s1 + $0x24] sm:$0xf]
  %v38 = vld [vmem:[%s1 + $0x28] sm:$0xf]
  %v39 = vld [vmem:[%s1 + $0x2c] sm:$0xf]
  %v40 = vld [vmem:[%s1 + $0x30] sm:$0xf]
  %v41 = vld [vmem:[%s1 + $0x34] sm:$0xf]
  %v42 = vld [vmem:[%s1 + $0x38] sm:$0xf]
  %v43 = vld [vmem:[%s1 + $0x3c] sm:$0xf]
  %v44 = vld [vmem:[%s1 + $0x40] sm:$0xf]
  %v45 = vld [vmem:[%s1 + $0x44] sm:$0xf]
  %v46 = vld [vmem:[%s1 + $0x48] sm:$0xf]
  %v47 = vld [vmem:[%s1 + $0x4c] sm:$0xf]
  %v48 = vld [vmem:[%s1 + $0x50] sm:$0xf]
  %v49 = vld [vmem:[%s1 + $0x54] sm:$0xf]
  %v50 = vld [vmem:[%s1 + $0x58] sm:$0xf]
  %v51 = vld [vmem:[%s1 + $0x5c] sm:$0xf]
  %v52 = vld [vmem:[%s1 + $0x60] sm:$0xf]
  %v53 = vld [vmem:[%s1 + $0x64] sm:$0xf]
  %v54 = vld [vmem:[%s1 + $0x68] sm:$0xf]
  %v55 = vld [vmem:[%s1 + $0x6c] sm:$0xf]
  %v56 = vld [vmem:[%s1 + $0x70] sm:$0xf]
  %v57 = vld [vmem:[%s1 + $0x74] sm:$0xf]
  %v58 = vld [vmem:[%s1 + $0x78] sm:$0xf]
  %v59 = vld [vmem:[%s1 + $0x7c] sm:$0xf]
  %v60 = vld [vmem:[%s1 + $0x80] sm:$0xf]
  %v61 = vld [vmem:[%s1 + $0x84] sm:$0xf]
  %v62 = vld [vmem:[%s1 + $0x88] sm:$0xf]
  %v63 = vld [vmem:[%s1 + $0x8c] sm:$0xf]
  %v72 = vunpack.c.l.b16 %v20
  %v73 = vunpack.c.h.b16 %v20
  %v74 = vunpack.c.l.b16 %v21
  %v75 = vunpack.c.l.b16 %v22
  %v76 = vunpack.c.h.b16 %v22
  %v77 = vunpack.c.l.b16 %v23
  %v78 = vunpack.c.l.b16 %v24
  %v79 = vunpack.c.h.b16 %v24
  %v80 = vunpack.c.l.b16 %v25
  %v81 = vunpack.c.l.b16 %v26
  %v82 = vunpack.c.h.b16 %v26
  %v83 = vunpack.c.l.b16 %v27
  %v84 = vpack.c.b16 %v75, %v72
  %v85 = vpack.c.b16 %v76, %v73
  %v86 = vpack.c.b16 %v77, %v74
  %v87 = vpack.c.b16 %v81, %v78
  %v88 = vpack.c.b16 %v82, %v79
  %v89 = vpack.c.b16 %v83, %v80
  %v130 = vunpack.c.l.b16 %v28
  %v131 = vunpack.c.l.b16 %v29
  %v132 = vunpack.c.l.b16 %v30
  %v133 = vunpack.c.l.b16 %v31
  %v134 = vunpack.c.l.b16 %v32
  %v135 = vunpack.c.l.b16 %v33
  %v136 = vunpack.c.l.b16 %v34
  %v137 = vunpack.c.l.b16 %v35
  %v138 = vunpack.c.l.b16 %v36
  %v139 = vunpack.c.l.b16 %v37
  %v140 = vunpack.c.l.b16 %v38
  %v141 = vunpack.c.l.b16 %v39
  %v142 = vunpack.c.l.b16 %v40
  %v143 = vunpack.c.l.b16 %v41
  %v144 = vunpack.c.l.b16 %v42
  %v145 = vunpack.c.l.b16 %v43
  %v146 = vunpack.c.l.b16 %v44
  %v147 = vunpack.c.l.b16 %v45
  %v148 = vunpack.c.l.b16 %v46
  %v149 = vunpack.c.l.b16 %v47
  %v150 = vunpack.c.l.b16 %v48
  %v151 = vunpack.c.l.b16 %v49
  %v152 = vunpack.c.l.b16 %v50
  %v153 = vunpack.c.l.b16 %v51
  %v154 = vunpack.c.l.b16 %v52
  %v155 = vunpack.c.l.b16 %v53
  %v156 = vunpack.c.l.b16 %v54
  %v157 = vunpack.c.l.b16 %v55
  %v158 = vunpack.c.l.b16 %v56
  %v159 = vunpack.c.l.b16 %v57
  %v160 = vunpack.c.l.b16 %v58
  %v161 = vunpack.c.l.b16 %v59
  %v162 = vunpack.c.l.b16 %v60
  %v163 = vunpack.c.l.b16 %v61
  %v164 = vunpack.c.l.b16 %v62
  %v165 = vunpack.c.l.b16 %v63
  %v166 = vpack.c.b16 %v131, %v130
  %v167 = vpack.c.b16 %v133, %v132
  %v168 = vpack.c.b16 %v135, %v134
  %v169 = vpack.c.b16 %v137, %v136
  %v170 = vpack.c.b16 %v139, %v138
  %v171 = vpack.c.b16 %v141, %v140
  %v172 = vpack.c.b16 %v143, %v142
  %v173 = vpack.c.b16 %v145, %v144
  %v174 = vpack.c.b16 %v147, %v146
  %v175 = vpack.c.b16 %v149, %v148
  %v176 = vpack.c.b16 %v151, %v150
  %v177 = vpack.c.b16 %v153, %v152
  %v178 = vpack.c.b16 %v155, %v154
  %v179 = vpack.c.b16 %v157, %v156
  %v180 = vpack.c.b16 %v159, %v158
  %v181 = vpack.c.b16 %v161, %v160
  %v182 = vpack.c.b16 %v163, %v162
  %v183 = vpack.c.b16 %v165, %v164
  %vm202 = vcmask 261120
  %v204 = vsel %vm202, %v86, 0
  %v207 = vsel %vm202, %v89, 0
  %209 = vmatpush.bf16.msra.mxu0 %v173
  %210 = vmatpush.bf16.msra.mxu0 %v172
  %211 = vmatpush.bf16.msra.mxu0 %v171
  %212 = vmatpush.bf16.msra.mxu0 %v170
  %213 = vmatpush.bf16.msra.mxu0 %v169
  %214 = vmatpush.bf16.msra.mxu0 %v168
  %215 = vmatpush.bf16.msra.mxu0 %v167
  %216 = vmatpush.bf16.msra.mxu0 %v166
  %217 = vmatmul.bf16.gmra.mxu0 %v84
  %v218 = vpop.f32.mrf.mxu0
  %v219 = vadd.f32 0.0, %v218
  %v220 = vpop.f32.mrf.mxu0
  %v221 = vadd.f32 0.0, %v220
  %222 = vmatmul.bf16.gmra.mxu0 %v87
  %v223 = vpop.f32.mrf.mxu0
  %v224 = vadd.f32 0.0, %v223
  %v225 = vpop.f32.mrf.mxu0
  %v226 = vadd.f32 0.0, %v225
  %227 = vdwg.mxu0
  %228 = vmatpush.bf16.msra.mxu0 %v181
  %229 = vmatpush.bf16.msra.mxu0 %v180
  %230 = vmatpush.bf16.msra.mxu0 %v179
  %231 = vmatpush.bf16.msra.mxu0 %v178
  %232 = vmatpush.bf16.msra.mxu0 %v177
  %233 = vmatpush.bf16.msra.mxu0 %v176
  %234 = vmatpush.bf16.msra.mxu0 %v175
  %235 = vmatpush.bf16.msra.mxu0 %v174
  %236 = vmatmul.bf16.gmra.mxu0 %v85
  %v237 = vpop.f32.mrf.mxu0
  %v238 = vadd.f32 %v219, %v237
  %v239 = vpop.f32.mrf.mxu0
  %v240 = vadd.f32 %v221, %v239
  %241 = vmatmul.bf16.gmra.mxu0 %v88
  %v242 = vpop.f32.mrf.mxu0
  %v243 = vadd.f32 %v224, %v242
  %v244 = vpop.f32.mrf.mxu0
  %v245 = vadd.f32 %v226, %v244
  %246 = vdwg.mxu0
  %247 = vmatpush.bf16.msra.mxu0 0
  %248 = vmatpush.bf16.msra.mxu0 0
  %249 = vmatpush.bf16.msra.mxu0 0
  %250 = vmatpush.bf16.msra.mxu0 0
  %251 = vmatpush.bf16.msra.mxu0 0
  %252 = vmatpush.bf16.msra.mxu0 0
  %253 = vmatpush.bf16.msra.mxu0 %v183
  %254 = vmatpush.bf16.msra.mxu0 %v182
  %255 = vmatmul.bf16.gmra.mxu0 %v204
  %v256 = vpop.f32.mrf.mxu0
  %v257 = vadd.f32 %v238, %v256
  %v258 = vpop.f32.mrf.mxu0
  %v259 = vadd.f32 %v240, %v258
  %260 = vmatmul.bf16.gmra.mxu0 %v207
  %v261 = vpop.f32.mrf.mxu0
  %v262 = vadd.f32 %v243, %v261
  %v263 = vpop.f32.mrf.mxu0
  %v264 = vadd.f32 %v245, %v263
  %265 = vdwg.mxu0
  %v266 = vld [vmem:[%s3] sm:$0xff]
  %v267 = vld [vmem:[%s3 + $0x8] sm:$0xff]
  %v268 = vld [vmem:[%s3 + $0x10] sm:$0xff]
  %v269 = vld [vmem:[%s3 + $0x18] sm:$0xff]
  %v270 = vadd.f32 %v266, %v257
  %v271 = vadd.f32 %v267, %v259
  %v272 = vadd.f32 %v268, %v262
  %v273 = vadd.f32 %v269, %v264
  %v274 = vxor.u32 %v270, 2147483648
  %v275 = vxor.u32 %v271, 2147483648
  %v276 = vxor.u32 %v272, 2147483648
  %v277 = vxor.u32 %v273, 2147483648
  %v278 = vmul.f32 %v274, 1.442695
  %v279 = vpow.pop %v278
  %v280 = vmul.f32 %v275, 1.442695
  %v281 = vpow.pop %v280
  %v282 = vmul.f32 %v276, 1.442695
  %v283 = vpow.pop %v282
  %v284 = vmul.f32 %v277, 1.442695
  %v285 = vpow.pop %v284
  %v286 = vadd.f32 %v279, 1.0
  %v287 = vadd.f32 %v281, 1.0
  %v288 = vadd.f32 %v283, 1.0
  %v289 = vadd.f32 %v285, 1.0
  %v290 = vrcp.pop %v286
  %v291 = vmul.f32 %v286, %v290
  %v292 = vsub.f32 1.0, %v291
  %v293 = vmul.f32 %v290, %v292
  %v294 = vadd.f32 %v290, %v293
  %vm295 = vweird.f32 %v286
  %vm296 = vweird.f32 %v290
  %vm297 = vmor %vm295, %vm296
  %v298 = vsel %vm297, %v290, %v294
  %v299 = vand.u32 2147483647, %v286
  %vm300 = vcmp.eq.f32.partialorder %v299, 8.507059e+37
  %v301 = vand.u32 %v286, 2147483648
  %v302 = vor.u32 1.1754944e-38, %v301
  %v303 = vsel %vm300, %v302, %v298
  %v304 = vmul.f32 1.0, %v303
  %v305 = vrcp.pop %v287
  %v306 = vmul.f32 %v287, %v305
  %v307 = vsub.f32 1.0, %v306
  %v308 = vmul.f32 %v305, %v307
  %v309 = vadd.f32 %v305, %v308
  %vm310 = vweird.f32 %v287
  %vm311 = vweird.f32 %v305
  %vm312 = vmor %vm310, %vm311
  %v313 = vsel %vm312, %v305, %v309
  %v314 = vand.u32 2147483647, %v287
  %vm315 = vcmp.eq.f32.partialorder %v314, 8.507059e+37
  %v316 = vand.u32 %v287, 2147483648
  %v317 = vor.u32 1.1754944e-38, %v316
  %v318 = vsel %vm315, %v317, %v313
  %v319 = vmul.f32 1.0, %v318
  %v320 = vrcp.pop %v288
  %v321 = vmul.f32 %v288, %v320
  %v322 = vsub.f32 1.0, %v321
  %v323 = vmul.f32 %v320, %v322
  %v324 = vadd.f32 %v320, %v323
  %vm325 = vweird.f32 %v288
  %vm326 = vweird.f32 %v320
  %vm327 = vmor %vm325, %vm326
  %v328 = vsel %vm327, %v320, %v324
  %v329 = vand.u32 2147483647, %v288
  %vm330 = vcmp.eq.f32.partialorder %v329, 8.507059e+37
  %v331 = vand.u32 %v288, 2147483648
  %v332 = vor.u32 1.1754944e-38, %v331
  %v333 = vsel %vm330, %v332, %v328
  %v334 = vmul.f32 1.0, %v333
  %v335 = vrcp.pop %v289
  %v336 = vmul.f32 %v289, %v335
  %v337 = vsub.f32 1.0, %v336
  %v338 = vmul.f32 %v335, %v337
  %v339 = vadd.f32 %v335, %v338
  %vm340 = vweird.f32 %v289
  %vm341 = vweird.f32 %v335
  %vm342 = vmor %vm340, %vm341
  %v343 = vsel %vm342, %v335, %v339
  %v344 = vand.u32 2147483647, %v289
  %vm345 = vcmp.eq.f32.partialorder %v344, 8.507059e+37
  %v346 = vand.u32 %v289, 2147483648
  %v347 = vor.u32 1.1754944e-38, %v346
  %v348 = vsel %vm345, %v347, %v343
  %v349 = vmul.f32 1.0, %v348
  %v350 = vtanh.pop %v257
  %v351 = vtanh.pop %v259
  %v352 = vtanh.pop %v262
  %v353 = vtanh.pop %v264
  %358 = vrot.lane.b32.xlu0 %v350, 112
  %v359 = vpop.permute.xlu0 %358
  %360 = vrot.lane.b32.xlu0 %v351, 112
  %v361 = vpop.permute.xlu0 %360
  %362 = vrot.lane.b32.xlu0 %v352, 112
  %v363 = vpop.permute.xlu0 %362
  %364 = vrot.lane.b32.xlu0 %v353, 112
  %v365 = vpop.permute.xlu0 %364
  %v370 = vmul.f32 %v304, %v359
  %v371 = vmul.f32 %v319, %v361
  %v372 = vmul.f32 %v334, %v363
  %v373 = vmul.f32 %v349, %v365
  %vm374 = vcmask 130048
  %375 = vst.msk [vmem:[%s4] sm:$0xff] %vm374, %v370
  %376 = vst.msk [vmem:[%s4 + $0x8] sm:$0xff] %vm374, %v371
  %377 = vst.msk [vmem:[%s4 + $0x10] sm:$0xff] %vm374, %v372
  %378 = vst.msk [vmem:[%s4 + $0x18] sm:$0xff] %vm374, %v373
  %v379 = vpack.c.bf16 %v371, %v370
  %v380 = vpack.c.bf16 %v373, %v372
  %v381 = vld [vmem:[%s2] sm:$0xf]
  %v382 = vld [vmem:[%s2 + $0x4] sm:$0xf]
  %v385 = vunpack.c.l.b16 %v381
  %v386 = vunpack.c.l.b16 %v382
  %v387 = vpack.c.b16 %v386, %v385
  %v390 = vsel %vm374, %v379, 0
  %v393 = vsel %vm374, %v380, 0
  %395 = vmatpush.bf16.msra.mxu0 0
  %396 = vmatpush.bf16.msra.mxu0 0
  %397 = vmatpush.bf16.msra.mxu0 0
  %398 = vmatpush.bf16.msra.mxu0 0
  %399 = vmatpush.bf16.msra.mxu0 0
  %400 = vmatpush.bf16.msra.mxu0 0
  %401 = vmatpush.bf16.msra.mxu0 0
  %402 = vmatpush.bf16.msra.mxu0 %v387
  %403 = vmatmul.bf16.gmra.mxu0 %v390
  %v404 = vpop.f32.mrf.mxu0
  %v405 = vadd.f32 0.0, %v404
  %v406 = vpop.f32.mrf.mxu0
  %v407 = vadd.f32 0.0, %v406
  %408 = vmatmul.bf16.gmra.mxu0 %v393
  %v409 = vpop.f32.mrf.mxu0
  %v410 = vadd.f32 0.0, %v409
  %v411 = vpop.f32.mrf.mxu0
  %v412 = vadd.f32 0.0, %v411
  %413 = vdwg.mxu0
  %414 = vst.msk [vmem:[%s5] sm:$0xff] %vm374, %v405
  %415 = vst.msk [vmem:[%s5 + $0x8] sm:$0xff] %vm374, %v407
  %416 = vst.msk [vmem:[%s5 + $0x10] sm:$0xff] %vm374, %v410
  %417 = vst.msk [vmem:[%s5 + $0x18] sm:$0xff] %vm374, %v412
  // Predicated region
  $region18: #{_lambda_.24} parent=0 // pred_check
    _
  $region19: #{_lambda_.24} parent=0 // pred_check_branch
    %419 = sbr.rel (0) target = $region21
  $region20: #{_lambda_.24} parent=0 // pred_region
    _
  $region21: #{_lambda_.24} parent=0 // pred_fallthru
    _
  // Predicated region
  $region22: #{_lambda_.24} parent=0 // pred_check
    _
  $region23: #{_lambda_.24} parent=0 // pred_check_branch
    %421 = sbr.rel (0) target = $region25
  $region24: #{_lambda_.24} parent=0 // pred_region
    _
  $region25: #{_lambda_.24} parent=0 // pred_fallthru
    _
  // Predicated region
  $region26: #{_lambda_.24} parent=0 // pred_check
    _
  $region27: #{_lambda_.24} parent=0 // pred_check_branch
    %423 = sbr.rel (0) target = $region29
  $region28: #{_lambda_.24} parent=0 // pred_region
    _
  $region29: #{_lambda_.24} parent=0 // pred_fallthru
    _
  // Predicated region
  $region30: #{_lambda_.24} parent=0 // pred_check
    _
  $region31: #{_lambda_.24} parent=0 // pred_check_branch
    %425 = sbr.rel (0) target = $region33
  $region32: #{_lambda_.24} parent=0 // pred_region
    _
  $region33: #{_lambda_.24} parent=0 // pred_fallthru
    _

// kernel: _lambda_.40
$region0: #{_lambda_.40}
  #allocation0 [shape = 'u32[]', space=smem, size = 0x4, offset = 0x4, fixed_abs, tag = 'smem constant byte address 0x4 - core index']
  #allocation1 [shape = 'u32[72,128]{1,0:T(1,128)}', space=vmem, size = 0x9000, scoped, tag = 'internal scratch']
  %s0 = inlined_call_operand.vmem [shape: bf16[32,288], index: 0, kind: input, shape index: {}]
  %s1 = inlined_call_operand.vmem [shape: bf16[288,32], index: 1, kind: input, shape index: {}]
  %s2 = inlined_call_operand.vmem [shape: bf16[16,16], index: 2, kind: input, shape index: {}]
  %s3 = inlined_call_operand.vmem [shape: f32[32,16], index: 3, kind: input, shape index: {}]
  %s4 = inlined_call_operand.hbm [shape: f32[32,16], index: 4, kind: output, shape index: {0}]
  %s5 = inlined_call_operand.vmem [shape: f32[32,16], index: 5, kind: output, shape index: {1}]
  %6 = xla_tuple %s4, %s5
  %s7 = sld [smem:[#allocation0]]
  $region34: #{_lambda_.40} parent=0
    _
  %s9 = ssub.s32 1, %s7
  %s10 = scalar_select 0, %s9, %s7
  $region1: #{_lambda_.40} parent=0
    #allocation2 [shape = 'u8[16384]{0}', space=vmem, size = 0x4000, scoped, tag = 'output window, operand 0, single buffered']
    #allocation3 [shape = 's32[1]{0}', space=sflag, size = 0x4, scoped, tag = 'scoped memory for _lambda_.40']
    %11 = vsyncpa [#allocation3], 0
    // Predicated region
    $region2: #{_lambda_.40} parent=1 // pred_check
      _
    $region3: #{_lambda_.40} parent=1 // pred_check_branch
      %13 = sbr.rel (0) target = $region5
    $region4: #{_lambda_.40} parent=1 // pred_region
      _
    $region5: #{_lambda_.40} parent=1 // pred_fallthru
      _
    // Predicated region
    $region6: #{_lambda_.40} parent=1 // pred_check
      _
    $region7: #{_lambda_.40} parent=1 // pred_check_branch
      %15 = sbr.rel (0) target = $region9
    $region8: #{_lambda_.40} parent=1 // pred_region
      _
    $region9: #{_lambda_.40} parent=1 // pred_fallthru
      _
    // Predicated region
    $region10: #{_lambda_.40} parent=1 // pred_check
      _
    $region11: #{_lambda_.40} parent=1 // pred_check_branch
      %17 = sbr.rel (0) target = $region13
    $region12: #{_lambda_.40} parent=1 // pred_region
      _
    $region13: #{_lambda_.40} parent=1 // pred_fallthru
      _
    // Predicated region
    $region14: #{_lambda_.40} parent=1 // pred_check
      _
    $region15: #{_lambda_.40} parent=1 // pred_check_branch
      %19 = sbr.rel (0) target = $region17
    $region16: #{_lambda_.40} parent=1 // pred_region
      _
    $region17: #{_lambda_.40} parent=1 // pred_fallthru
      _
    %v21 = vld [vmem:[%s0] sm:$0xff]
    %v22 = vld [vmem:[%s0 + $0x8] sm:$0xf]
    %v23 = vld [vmem:[%s0 + $0xc] sm:$0xff]
    %v24 = vld [vmem:[%s0 + $0x14] sm:$0xf]
    %v25 = vld [vmem:[%s0 + $0x18] sm:$0xff]
    %v26 = vld [vmem:[%s0 + $0x20] sm:$0xf]
    %v27 = vld [vmem:[%s0 + $0x24] sm:$0xff]
    %v28 = vld [vmem:[%s0 + $0x2c] sm:$0xf]
    %v29 = vld [vmem:[%s1] sm:$0xf]
    %v30 = vld [vmem:[%s1 + $0x4] sm:$0xf]
    %v31 = vld [vmem:[%s1 + $0x8] sm:$0xf]
    %v32 = vld [vmem:[%s1 + $0xc] sm:$0xf]
    %v33 = vld [vmem:[%s1 + $0x10] sm:$0xf]
    %v34 = vld [vmem:[%s1 + $0x14] sm:$0xf]
    %v35 = vld [vmem:[%s1 + $0x18] sm:$0xf]
    %v36 = vld [vmem:[%s1 + $0x1c] sm:$0xf]
    %v37 = vld [vmem:[%s1 + $0x20] sm:$0xf]
    %v38 = vld [vmem:[%s1 + $0x24] sm:$0xf]
    %v39 = vld [vmem:[%s1 + $0x28] sm:$0xf]
    %v40 = vld [vmem:[%s1 + $0x2c] sm:$0xf]
    %v41 = vld [vmem:[%s1 + $0x30] sm:$0xf]
    %v42 = vld [vmem:[%s1 + $0x34] sm:$0xf]
    %v43 = vld [vmem:[%s1 + $0x38] sm:$0xf]
    %v44 = vld [vmem:[%s1 + $0x3c] sm:$0xf]
    %v45 = vld [vmem:[%s1 + $0x40] sm:$0xf]
    %v46 = vld [vmem:[%s1 + $0x44] sm:$0xf]
    %v47 = vld [vmem:[%s1 + $0x48] sm:$0xf]
    %v48 = vld [vmem:[%s1 + $0x4c] sm:$0xf]
    %v49 = vld [vmem:[%s1 + $0x50] sm:$0xf]
    %v50 = vld [vmem:[%s1 + $0x54] sm:$0xf]
    %v51 = vld [vmem:[%s1 + $0x58] sm:$0xf]
    %v52 = vld [vmem:[%s1 + $0x5c] sm:$0xf]
    %v53 = vld [vmem:[%s1 + $0x60] sm:$0xf]
    %v54 = vld [vmem:[%s1 + $0x64] sm:$0xf]
    %v55 = vld [vmem:[%s1 + $0x68] sm:$0xf]
    %v56 = vld [vmem:[%s1 + $0x6c] sm:$0xf]
    %v57 = vld [vmem:[%s1 + $0x70] sm:$0xf]
    %v58 = vld [vmem:[%s1 + $0x74] sm:$0xf]
    %v59 = vld [vmem:[%s1 + $0x78] sm:$0xf]
    %v60 = vld [vmem:[%s1 + $0x7c] sm:$0xf]
    %v61 = vld [vmem:[%s1 + $0x80] sm:$0xf]
    %v62 = vld [vmem:[%s1 + $0x84] sm:$0xf]
    %v63 = vld [vmem:[%s1 + $0x88] sm:$0xf]
    %v64 = vld [vmem:[%s1 + $0x8c] sm:$0xf]
    %v73 = vunpack.c.l.b16 %v21
    %v74 = vunpack.c.h.b16 %v21
    %v75 = vunpack.c.l.b16 %v22
    %v76 = vunpack.c.l.b16 %v23
    %v77 = vunpack.c.h.b16 %v23
    %v78 = vunpack.c.l.b16 %v24
    %v79 = vunpack.c.l.b16 %v25
    %v80 = vunpack.c.h.b16 %v25
    %v81 = vunpack.c.l.b16 %v26
    %v82 = vunpack.c.l.b16 %v27
    %v83 = vunpack.c.h.b16 %v27
    %v84 = vunpack.c.l.b16 %v28
    %v85 = vpack.c.b16 %v76, %v73
    %v86 = vpack.c.b16 %v77, %v74
    %v87 = vpack.c.b16 %v78, %v75
    %v88 = vpack.c.b16 %v82, %v79
    %v89 = vpack.c.b16 %v83, %v80
    %v90 = vpack.c.b16 %v84, %v81
    %v131 = vunpack.c.l.b16 %v29
    %v132 = vunpack.c.l.b16 %v30
    %v133 = vunpack.c.l.b16 %v31
    %v134 = vunpack.c.l.b16 %v32
    %v135 = vunpack.c.l.b16 %v33
    %v136 = vunpack.c.l.b16 %v34
    %v137 = vunpack.c.l.b16 %v35
    %v138 = vunpack.c.l.b16 %v36
    %v139 = vunpack.c.l.b16 %v37
    %v140 = vunpack.c.l.b16 %v38
    %v141 = vunpack.c.l.b16 %v39
    %v142 = vunpack.c.l.b16 %v40
    %v143 = vunpack.c.l.b16 %v41
    %v144 = vunpack.c.l.b16 %v42
    %v145 = vunpack.c.l.b16 %v43
    %v146 = vunpack.c.l.b16 %v44
    %v147 = vunpack.c.l.b16 %v45
    %v148 = vunpack.c.l.b16 %v46
    %v149 = vunpack.c.l.b16 %v47
    %v150 = vunpack.c.l.b16 %v48
    %v151 = vunpack.c.l.b16 %v49
    %v152 = vunpack.c.l.b16 %v50
    %v153 = vunpack.c.l.b16 %v51
    %v154 = vunpack.c.l.b16 %v52
    %v155 = vunpack.c.l.b16 %v53
    %v156 = vunpack.c.l.b16 %v54
    %v157 = vunpack.c.l.b16 %v55
    %v158 = vunpack.c.l.b16 %v56
    %v159 = vunpack.c.l.b16 %v57
    %v160 = vunpack.c.l.b16 %v58
    %v161 = vunpack.c.l.b16 %v59
    %v162 = vunpack.c.l.b16 %v60
    %v163 = vunpack.c.l.b16 %v61
    %v164 = vunpack.c.l.b16 %v62
    %v165 = vunpack.c.l.b16 %v63
    %v166 = vunpack.c.l.b16 %v64
    %v167 = vpack.c.b16 %v132, %v131
    %v168 = vpack.c.b16 %v134, %v133
    %v169 = vpack.c.b16 %v136, %v135
    %v170 = vpack.c.b16 %v138, %v137
    %v171 = vpack.c.b16 %v140, %v139
    %v172 = vpack.c.b16 %v142, %v141
    %v173 = vpack.c.b16 %v144, %v143
    %v174 = vpack.c.b16 %v146, %v145
    %v175 = vpack.c.b16 %v148, %v147
    %v176 = vpack.c.b16 %v150, %v149
    %v177 = vpack.c.b16 %v152, %v151
    %v178 = vpack.c.b16 %v154, %v153
    %v179 = vpack.c.b16 %v156, %v155
    %v180 = vpack.c.b16 %v158, %v157
    %v181 = vpack.c.b16 %v160, %v159
    %v182 = vpack.c.b16 %v162, %v161
    %v183 = vpack.c.b16 %v164, %v163
    %v184 = vpack.c.b16 %v166, %v165
    %vm203 = vcmask 261120
    %v205 = vsel %vm203, %v87, 0
    %v208 = vsel %vm203, %v90, 0
    %210 = vmatpush.bf16.msra.mxu0 %v174
    %211 = vmatpush.bf16.msra.mxu0 %v173
    %212 = vmatpush.bf16.msra.mxu0 %v172
    %213 = vmatpush.bf16.msra.mxu0 %v171
    %214 = vmatpush.bf16.msra.mxu0 %v170
    %215 = vmatpush.bf16.msra.mxu0 %v169
    %216 = vmatpush.bf16.msra.mxu0 %v168
    %217 = vmatpush.bf16.msra.mxu0 %v167
    %218 = vmatmul.bf16.gmra.mxu0 %v85
    %v219 = vpop.f32.mrf.mxu0
    %v220 = vadd.f32 0.0, %v219
    %v221 = vpop.f32.mrf.mxu0
    %v222 = vadd.f32 0.0, %v221
    %223 = vmatmul.bf16.gmra.mxu0 %v88
    %v224 = vpop.f32.mrf.mxu0
    %v225 = vadd.f32 0.0, %v224
    %v226 = vpop.f32.mrf.mxu0
    %v227 = vadd.f32 0.0, %v226
    %228 = vdwg.mxu0
    %229 = vmatpush.bf16.msra.mxu0 %v182
    %230 = vmatpush.bf16.msra.mxu0 %v181
    %231 = vmatpush.bf16.msra.mxu0 %v180
    %232 = vmatpush.bf16.msra.mxu0 %v179
    %233 = vmatpush.bf16.msra.mxu0 %v178
    %234 = vmatpush.bf16.msra.mxu0 %v177
    %235 = vmatpush.bf16.msra.mxu0 %v176
    %236 = vmatpush.bf16.msra.mxu0 %v175
    %237 = vmatmul.bf16.gmra.mxu0 %v86
    %v238 = vpop.f32.mrf.mxu0
    %v239 = vadd.f32 %v220, %v238
    %v240 = vpop.f32.mrf.mxu0
    %v241 = vadd.f32 %v222, %v240
    %242 = vmatmul.bf16.gmra.mxu0 %v89
    %v243 = vpop.f32.mrf.mxu0
    %v244 = vadd.f32 %v225, %v243
    %v245 = vpop.f32.mrf.mxu0
    %v246 = vadd.f32 %v227, %v245
    %247 = vdwg.mxu0
    %248 = vmatpush.bf16.msra.mxu0 0
    %249 = vmatpush.bf16.msra.mxu0 0
    %250 = vmatpush.bf16.msra.mxu0 0
    %251 = vmatpush.bf16.msra.mxu0 0
    %252 = vmatpush.bf16.msra.mxu0 0
    %253 = vmatpush.bf16.msra.mxu0 0
    %254 = vmatpush.bf16.msra.mxu0 %v184
    %255 = vmatpush.bf16.msra.mxu0 %v183
    %256 = vmatmul.bf16.gmra.mxu0 %v205
    %v257 = vpop.f32.mrf.mxu0
    %v258 = vadd.f32 %v239, %v257
    %v259 = vpop.f32.mrf.mxu0
    %v260 = vadd.f32 %v241, %v259
    %261 = vmatmul.bf16.gmra.mxu0 %v208
    %v262 = vpop.f32.mrf.mxu0
    %v263 = vadd.f32 %v244, %v262
    %v264 = vpop.f32.mrf.mxu0
    %v265 = vadd.f32 %v246, %v264
    %266 = vdwg.mxu0
    %v267 = vld [vmem:[%s3] sm:$0xff]
    %v268 = vld [vmem:[%s3 + $0x8] sm:$0xff]
    %v269 = vld [vmem:[%s3 + $0x10] sm:$0xff]
    %v270 = vld [vmem:[%s3 + $0x18] sm:$0xff]
    %v271 = vadd.f32 %v267, %v258
    %v272 = vadd.f32 %v268, %v260
    %v273 = vadd.f32 %v269, %v263
    %v274 = vadd.f32 %v270, %v265
    %v275 = vxor.u32 %v271, 2147483648
    %v276 = vxor.u32 %v272, 2147483648
    %v277 = vxor.u32 %v273, 2147483648
    %v278 = vxor.u32 %v274, 2147483648
    %v279 = vmul.f32 %v275, 1.442695
    %v280 = vpow.pop %v279
    %v281 = vmul.f32 %v276, 1.442695
    %v282 = vpow.pop %v281
    %v283 = vmul.f32 %v277, 1.442695
    %v284 = vpow.pop %v283
    %v285 = vmul.f32 %v278, 1.442695
    %v286 = vpow.pop %v285
    %v287 = vadd.f32 %v280, 1.0
    %v288 = vadd.f32 %v282, 1.0
    %v289 = vadd.f32 %v284, 1.0
    %v290 = vadd.f32 %v286, 1.0
    %v291 = vrcp.pop %v287
    %v292 = vmul.f32 %v287, %v291
    %v293 = vsub.f32 1.0, %v292
    %v294 = vmul.f32 %v291, %v293
    %v295 = vadd.f32 %v291, %v294
    %vm296 = vweird.f32 %v287
    %vm297 = vweird.f32 %v291
    %vm298 = vmor %vm296, %vm297
    %v299 = vsel %vm298, %v291, %v295
    %v300 = vand.u32 2147483647, %v287
    %vm301 = vcmp.eq.f32.partialorder %v300, 8.507059e+37
    %v302 = vand.u32 %v287, 2147483648
    %v303 = vor.u32 1.1754944e-38, %v302
    %v304 = vsel %vm301, %v303, %v299
    %v305 = vmul.f32 1.0, %v304
    %v306 = vrcp.pop %v288
    %v307 = vmul.f32 %v288, %v306
    %v308 = vsub.f32 1.0, %v307
    %v309 = vmul.f32 %v306, %v308
    %v310 = vadd.f32 %v306, %v309
    %vm311 = vweird.f32 %v288
    %vm312 = vweird.f32 %v306
    %vm313 = vmor %vm311, %vm312
    %v314 = vsel %vm313, %v306, %v310
    %v315 = vand.u32 2147483647, %v288
    %vm316 = vcmp.eq.f32.partialorder %v315, 8.507059e+37
    %v317 = vand.u32 %v288, 2147483648
    %v318 = vor.u32 1.1754944e-38, %v317
    %v319 = vsel %vm316, %v318, %v314
    %v320 = vmul.f32 1.0, %v319
    %v321 = vrcp.pop %v289
    %v322 = vmul.f32 %v289, %v321
    %v323 = vsub.f32 1.0, %v322
    %v324 = vmul.f32 %v321, %v323
    %v325 = vadd.f32 %v321, %v324
    %vm326 = vweird.f32 %v289
    %vm327 = vweird.f32 %v321
    %vm328 = vmor %vm326, %vm327
    %v329 = vsel %vm328, %v321, %v325
    %v330 = vand.u32 2147483647, %v289
    %vm331 = vcmp.eq.f32.partialorder %v330, 8.507059e+37
    %v332 = vand.u32 %v289, 2147483648
    %v333 = vor.u32 1.1754944e-38, %v332
    %v334 = vsel %vm331, %v333, %v329
    %v335 = vmul.f32 1.0, %v334
    %v336 = vrcp.pop %v290
    %v337 = vmul.f32 %v290, %v336
    %v338 = vsub.f32 1.0, %v337
    %v339 = vmul.f32 %v336, %v338
    %v340 = vadd.f32 %v336, %v339
    %vm341 = vweird.f32 %v290
    %vm342 = vweird.f32 %v336
    %vm343 = vmor %vm341, %vm342
    %v344 = vsel %vm343, %v336, %v340
    %v345 = vand.u32 2147483647, %v290
    %vm346 = vcmp.eq.f32.partialorder %v345, 8.507059e+37
    %v347 = vand.u32 %v290, 2147483648
    %v348 = vor.u32 1.1754944e-38, %v347
    %v349 = vsel %vm346, %v348, %v344
    %v350 = vmul.f32 1.0, %v349
    %v351 = vtanh.pop %v258
    %v352 = vtanh.pop %v260
    %v353 = vtanh.pop %v263
    %v354 = vtanh.pop %v265
    %359 = vrot.lane.b32.xlu0 %v351, 112
    %v360 = vpop.permute.xlu0 %359
    %361 = vrot.lane.b32.xlu0 %v352, 112
    %v362 = vpop.permute.xlu0 %361
    %363 = vrot.lane.b32.xlu0 %v353, 112
    %v364 = vpop.permute.xlu0 %363
    %365 = vrot.lane.b32.xlu0 %v354, 112
    %v366 = vpop.permute.xlu0 %365
    %v371 = vmul.f32 %v305, %v360
    %v372 = vmul.f32 %v320, %v362
    %v373 = vmul.f32 %v335, %v364
    %v374 = vmul.f32 %v350, %v366
    %vm375 = vcmask 130048
    %376 = vst.msk [vmem:[#allocation2] sm:$0xff] %vm375, %v371
    %377 = vst.msk [vmem:[#allocation2 + $0x8] sm:$0xff] %vm375, %v372
    %378 = vst.msk [vmem:[#allocation2 + $0x10] sm:$0xff] %vm375, %v373
    %379 = vst.msk [vmem:[#allocation2 + $0x18] sm:$0xff] %vm375, %v374
    %v380 = vpack.c.bf16 %v372, %v371
    %v381 = vpack.c.bf16 %v374, %v373
    %v382 = vld [vmem:[%s2] sm:$0xf]
    %v383 = vld [vmem:[%s2 + $0x4] sm:$0xf]
    %v386 = vunpack.c.l.b16 %v382
    %v387 = vunpack.c.l.b16 %v383
    %v388 = vpack.c.b16 %v387, %v386
    %v391 = vsel %vm375, %v380, 0
    %v394 = vsel %vm375, %v381, 0
    %396 = vmatpush.bf16.msra.mxu0 0
    %397 = vmatpush.bf16.msra.mxu0 0
    %398 = vmatpush.bf16.msra.mxu0 0
    %399 = vmatpush.bf16.msra.mxu0 0
    %400 = vmatpush.bf16.msra.mxu0 0
    %401 = vmatpush.bf16.msra.mxu0 0
    %402 = vmatpush.bf16.msra.mxu0 0
    %403 = vmatpush.bf16.msra.mxu0 %v388
    %404 = vmatmul.bf16.gmra.mxu0 %v391
    %v405 = vpop.f32.mrf.mxu0
    %v406 = vadd.f32 0.0, %v405
    %v407 = vpop.f32.mrf.mxu0
    %v408 = vadd.f32 0.0, %v407
    %409 = vmatmul.bf16.gmra.mxu0 %v394
    %v410 = vpop.f32.mrf.mxu0
    %v411 = vadd.f32 0.0, %v410
    %v412 = vpop.f32.mrf.mxu0
    %v413 = vadd.f32 0.0, %v412
    %414 = vdwg.mxu0
    %415 = vst.msk [vmem:[%s5] sm:$0xff] %vm375, %v406
    %416 = vst.msk [vmem:[%s5 + $0x8] sm:$0xff] %vm375, %v408
    %417 = vst.msk [vmem:[%s5 + $0x10] sm:$0xff] %vm375, %v411
    %418 = vst.msk [vmem:[%s5 + $0x18] sm:$0xff] %vm375, %v413
    // Predicated region
    $region18: #{_lambda_.40} parent=1 // pred_check
      _
    $region19: #{_lambda_.40} parent=1 // pred_check_branch
      %420 = sbr.rel (0) target = $region21
    $region20: #{_lambda_.40} parent=1 // pred_region
      %422 = vsyncadd [#allocation3], 0
      %s423 = sshll.u32 [#allocation2], 4
      %s424 = int_to_ptr.vmem [resolvable:$true] %s423
      %s425 = sshll.u32 %s4, 4
      %s426 = int_to_ptr.hbm [resolvable:$true] %s425
      %431 = dma.vmem_to_hbm [thread:$0]  %s424, 512, %s426, [#allocation3], 128, 128, 8
    $region21: #{_lambda_.40} parent=1 // pred_fallthru
      _
    // Predicated region
    $region22: #{_lambda_.40} parent=1 // pred_check
      _
    $region23: #{_lambda_.40} parent=1 // pred_check_branch
      %433 = sbr.rel (0) target = $region25
    $region24: #{_lambda_.40} parent=1 // pred_region
      _
    $region25: #{_lambda_.40} parent=1 // pred_fallthru
      _
    // Predicated region
    $region26: #{_lambda_.40} parent=1 // pred_check
      _
    $region27: #{_lambda_.40} parent=1 // pred_check_branch
      %435 = sbr.rel (0) target = $region29
    $region28: #{_lambda_.40} parent=1 // pred_region
      %437 = dma.done [#allocation3], 512
    $region29: #{_lambda_.40} parent=1 // pred_fallthru
      _
    // Predicated region
    $region30: #{_lambda_.40} parent=1 // pred_check
      _
    $region31: #{_lambda_.40} parent=1 // pred_check_branch
      %439 = sbr.rel (0) target = $region33
    $region32: #{_lambda_.40} parent=1 // pred_region
      _
    $region33: #{_lambda_.40} parent=1 // pred_fallthru
      _
    %440 = vsyncpa [#allocation3], 1

// kernel: _lambda_.41
$region0: #{_lambda_.41}
  #allocation0 [shape = 'u32[]', space=smem, size = 0x4, offset = 0x4, fixed_abs, tag = 'smem constant byte address 0x4 - core index']
  #allocation1 [shape = 'u32[72,128]{1,0:T(1,128)}', space=vmem, size = 0x9000, scoped, tag = 'internal scratch']
  %s0 = inlined_call_operand.vmem [shape: f32[24,128], index: 0, kind: input, shape index: {}]
  %s1 = inlined_call_operand.vmem [shape: f32[24,128], index: 1, kind: input, shape index: {}]
  %s2 = inlined_call_operand.hbm [shape: f32[1,1], index: 2, kind: output, shape index: {}]
  %s3 = sld [smem:[#allocation0]]
  $region22: #{_lambda_.41} parent=0
    _
  %s5 = ssub.s32 1, %s3
  %s6 = scalar_select 0, %s5, %s3
  $region1: #{_lambda_.41} parent=0
    #allocation2 [shape = 'u8[512]{0}', space=vmem, size = 0x400, scoped, tag = 'output window, operand 0, single buffered']
    #allocation3 [shape = 's32[1]{0}', space=sflag, size = 0x4, scoped, tag = 'scoped memory for _lambda_.41']
    %7 = vsyncpa [#allocation3], 0
    // Predicated region
    $region2: #{_lambda_.41} parent=1 // pred_check
      _
    $region3: #{_lambda_.41} parent=1 // pred_check_branch
      %9 = sbr.rel (0) target = $region5
    $region4: #{_lambda_.41} parent=1 // pred_region
      _
    $region5: #{_lambda_.41} parent=1 // pred_fallthru
      _
    // Predicated region
    $region6: #{_lambda_.41} parent=1 // pred_check
      _
    $region7: #{_lambda_.41} parent=1 // pred_check_branch
      %11 = sbr.rel (0) target = $region9
    $region8: #{_lambda_.41} parent=1 // pred_region
      _
    $region9: #{_lambda_.41} parent=1 // pred_fallthru
      _
    %p12 = scmp.eq.s32.totalorder 0, 0
    // Predicated region
    $region10: #{_lambda_.41} parent=1 // pred_check
      %p13 = pneg %p12
    $region11: #{_lambda_.41} parent=1 // pred_check_branch
      %15 = sbr.rel (%p13) target = $region13
    $region12: #{_lambda_.41} parent=1 // pred_region
      %vm16 = vcmask 0
      %17 = vst.msk [vmem:[#allocation2] sm:$0x1] %vm16, 0.0
    $region13: #{_lambda_.41} parent=1 // pred_fallthru
      _
    %v18 = vld [vmem:[%s0] sm:$0xff]
    %v19 = vld [vmem:[%s0 + $0x8] sm:$0xff]
    %v20 = vld [vmem:[%s0 + $0x10] sm:$0xff]
    %v21 = vld [vmem:[%s1] sm:$0xff]
    %v22 = vld [vmem:[%s1 + $0x8] sm:$0xff]
    %v23 = vld [vmem:[%s1 + $0x10] sm:$0xff]
    %v24 = vsub.f32 %v18, %v21
    %v25 = vsub.f32 %v19, %v22
    %v26 = vsub.f32 %v20, %v23
    %v27 = vld [vmem:[#allocation2] sm:$0x1]
    %v28 = vmul.f32 %v24, %v24
    %v29 = vmul.f32 %v25, %v25
    %v30 = vmul.f32 %v26, %v26
    %v31 = vadd.f32 %v28, %v29
    %v32 = vadd.f32 %v31, %v30
    %33 = vadd.xlane.f32.xlu0 %v32
    %v34 = vpop.xlane.xlu0 %33
    %v35 = vrot.slane %v34, 4
    %v36 = vadd.f32 %v34, %v35
    %v37 = vrot.slane %v36, 2
    %v38 = vadd.f32 %v36, %v37
    %v39 = vrot.slane %v38, 1
    %v40 = vadd.f32 %v38, %v39
    %s41 = vtos %v40
    %v42 = vstv %s41
    %v43 = vadd.f32 %v27, %v42
    %vm44 = vcmask 0
    %45 = vst.msk [vmem:[#allocation2] sm:$0x1] %vm44, %v43
    // Predicated region
    $region14: #{_lambda_.41} parent=1 // pred_check
      _
    $region15: #{_lambda_.41} parent=1 // pred_check_branch
      %47 = sbr.rel (0) target = $region17
    $region16: #{_lambda_.41} parent=1 // pred_region
      %49 = vsyncadd [#allocation3], 0
      %s51 = sshll.u32 [#allocation2], 4
      %s52 = int_to_ptr.vmem [resolvable:$true] %s51
      %s53 = sshll.u32 %s2, 4
      %s54 = int_to_ptr.hbm [resolvable:$true] %s53
      %56 = dma.vmem_to_hbm [thread:$0]  %s52, 16, %s54, [#allocation3]
    $region17: #{_lambda_.41} parent=1 // pred_fallthru
      _
    // Predicated region
    $region18: #{_lambda_.41} parent=1 // pred_check
      _
    $region19: #{_lambda_.41} parent=1 // pred_check_branch
      %58 = sbr.rel (0) target = $region21
    $region20: #{_lambda_.41} parent=1 // pred_region
      %60 = dma.done [#allocation3], 16
    $region21: #{_lambda_.41} parent=1 // pred_fallthru
      _
    %61 = vsyncpa [#allocation3], 1

</llo_original>
